<compile_context>
chip_gen: v7x
topology: tpu7x:2x2x1
jax: 0.10.0
libtpu: 0.0.40
codegen_flags: <defaults>
</compile_context>

<pallas_src>
import functools

import jax
import jax.numpy as jnp
from jax import lax
from jax.experimental import pallas as pl
from jax.experimental.pallas import tpu as pltpu

NC_PAD = 128   # lane-dense padded output width (num_classes padded to 128)
DP = 8         # sublane-aligned per-branch block height (D = 6 padded to 8)


# ----------------------------------------------------------------------------
# Pure-JAX reference (literal translation; used only for the correctness check)
# ----------------------------------------------------------------------------
def knn(x, k):
    inner = -2.0 * jnp.matmul(x, jnp.swapaxes(x, 2, 1))      # (B, D, D)
    xx = jnp.sum(x * x, axis=1, keepdims=True)               # (B, 1, N)
    pairwise = -xx - inner - jnp.swapaxes(xx, 2, 1)          # (B, N, N)
    return jax.lax.top_k(pairwise, k)[1]                     # (B, N, k)


def get_graph_feature(x, k):
    B, D, N = x.shape
    idx = knn(x, k)
    idx_base = (jnp.arange(B, dtype=idx.dtype) * N).reshape(-1, 1, 1)
    idx = (idx + idx_base).reshape(-1)
    xt = jnp.swapaxes(x, 2, 1)
    flat = xt.reshape(B * N, D)
    feature = flat[idx, :].reshape(B, N, k, D)
    xc = jnp.broadcast_to(xt.reshape(B, N, 1, D), (B, N, k, D))
    feature = jnp.concatenate([feature - xc, xc], axis=3)
    return jnp.transpose(feature, (0, 3, 1, 2))              # (B, 2D, N, k)


def vndgcnn_reference(x, params, k):
    w1, w2, w3, wfc, bfc = params
    feat = get_graph_feature(x, k)                           # (B, 2D, N, k)
    h = jnp.einsum('oi,bcik->bcok', w1, feat)
    h = jax.nn.relu(jnp.einsum('oi,bcik->bcok', w2, h))
    h = jax.nn.relu(jnp.einsum('oi,bcik->bcok', w3, h))
    h = jnp.max(h, axis=-1)                                  # (B, 2D, 256)
    return jnp.einsum('bcf,of->bco', h, wfc) + bfc           # (B, 2D, NC)


# ----------------------------------------------------------------------------
# Fused Pallas kernel (single grid step handles the whole batch)
# ----------------------------------------------------------------------------
def _vndgcnn_kernel(x_ref, w21t_ref, w3t_ref, wfct_ref, bfc_ref, o_ref,
                    mstack_ref, fcin_ref, *, k):
    """Fully fused forward: kNN + edge features + layers 1..3 + max-k + fc.

    x_ref      : (B, D, N) f32        point clouds (D == N == 6)
    w21t_ref   : (DP, 128) bf16       (W2 @ W1)^T, rows N..DP-1 zero
    w3t_ref    : (128, 256) bf16      W3^T
    wfct_ref   : (256, NC_PAD) bf16   fc weight^T, zero-padded lanes
    bfc_ref    : (1, NC_PAD) f32      fc bias, zero-padded lanes
    o_ref      : (B, 2D, NC_PAD) f32  rows 0..D-1 = edge half, D..2D-1 = center
    mstack_ref : (B*(k+1)*DP, DP) f32 stacked diff/center blocks (scratch)
    fcin_ref   : (B*2*DP, 256) f32    stacked fc operand (scratch)
    """
    B, D, N = x_ref.shape
    NB = k + 1                                   # k edge branches + 1 center

    w21t = w21t_ref[...]
    w3t = w3t_ref[...]
    wfct = wfct_ref[...]
    bfc = bfc_ref[...]

    # ---------- stage 1: fused kNN + graph-feature assembly ------------------
    # A single zeroed scratch provides the (D=6 -> 8)-row and (N=6 -> 8)-lane
    # padding of every branch block for free: only rows 0..D-1 / lanes 0..N-1
    # are ever written, so all downstream slices are (8, .)-aligned.
    mstack_ref[...] = jnp.zeros(mstack_ref.shape, jnp.float32)

    col_f = lax.broadcasted_iota(jnp.int32, (N, N), 1).astype(jnp.float32)
    trans_b = (((1,), (1,)), ((), ()))           # contract dim 1 of both sides

    for b in range(B):                           # B == 2: fully unrolled
        row0 = b * NB * DP
        xb = x_ref[b]                            # (D, N) f32
        xb_bf = xb.astype(jnp.bfloat16)

        # Reference pairwise "distance" (degenerate D == N semantics):
        #   P[i, j] = 2*(x x^T)[i, j] - s[j] - s[i],  s[j] = sum_d x[d, j]^2.
        # The per-row constant -s[i] cannot change the per-row top-k order,
        # so it is dropped (keeps everything row-oriented, no transposes).
        gram = lax.dot_general(xb, xb, trans_b,
                               preferred_element_type=jnp.float32)   # (N, N)
        s = jnp.sum(xb * xb, axis=0, keepdims=True)                  # (1, N)
        scores = 2.0 * gram - s                                      # (N, N)

        # Center branch block (k-independent: max over k of identical copies).
        mstack_ref[row0 + k * DP:row0 + k * DP + D, 0:N] = xb

        # top-k as k unrolled argmax/mask passes (ties -> smallest index,
        # matching lax.top_k); each argmax one-hot doubles as the gather
        # matrix, so no integer index tensor is ever materialised.
        rem = scores
        for kk in range(k):
            rmax = jnp.max(rem, axis=1, keepdims=True)               # (N, 1)
            hit = rem >= rmax
            first = jnp.min(jnp.where(hit, col_f, float(N)),
                            axis=1, keepdims=True)                   # (N, 1)
            onehot = col_f == first                                  # (N, N)
            # gathered[c, n] = x[c, idx[n, kk]]   (one-hot is exact in bf16)
            gathered = lax.dot_general(
                xb_bf, onehot.astype(jnp.bfloat16), trans_b,
                preferred_element_type=jnp.float32)                  # (D, N)
            mstack_ref[row0 + kk * DP:row0 + kk * DP + D, 0:N] = gathered - xb
            rem = jnp.where(onehot, -jnp.inf, rem)

    # ---------- stage 2: all branches & batches through ONE matmul per layer -
    m_all = mstack_ref[...].astype(jnp.bfloat16)                     # (80, 8)
    h1 = jnp.maximum(
        jnp.dot(m_all, w21t, preferred_element_type=jnp.float32), 0.0)
    h2 = jnp.maximum(
        jnp.dot(h1.astype(jnp.bfloat16), w3t,
                preferred_element_type=jnp.float32), 0.0)            # (80, 256)

    # ---------- stage 3: max over k on aligned 8-row blocks + ONE fused fc ---
    for b in range(B):
        row0 = b * NB * DP
        edge = h2[row0:row0 + DP, :]
        for kk in range(1, k):
            edge = jnp.maximum(edge,
                               h2[row0 + kk * DP:row0 + (kk + 1) * DP, :])
        fcin_ref[b * 2 * DP:b * 2 * DP + DP, :] = edge
        fcin_ref[b * 2 * DP + DP:(b + 1) * 2 * DP, :] = \
            h2[row0 + k * DP:row0 + NB * DP, :]

    fc_out = jnp.dot(fcin_ref[...].astype(jnp.bfloat16), wfct,
                     preferred_element_type=jnp.float32) + bfc       # (32, 128)

    for b in range(B):
        o_ref[b, 0:D, :] = fc_out[b * 2 * DP:b * 2 * DP + D, :]
        o_ref[b, D:2 * D, :] = fc_out[b * 2 * DP + DP:b * 2 * DP + DP + D, :]


# ----------------------------------------------------------------------------
# One-time weight preparation + wrapper
# ----------------------------------------------------------------------------
def prepare_params(params):
    """layer1+layer2 algebraic fusion (layer1 has no ReLU), transposes,
    bf16 casts and lane/sublane zero padding -- hoisted out of the call path."""
    w1, w2, w3, wfc, bfc = params
    nc, hidden = wfc.shape
    n_in = w1.shape[1]                                               # 6
    w21 = jnp.dot(w2, w1)                                            # (128, 6)
    w21t = jnp.zeros((DP, w21.shape[0]), jnp.float32)
    w21t = w21t.at[:n_in, :].set(w21.T).astype(jnp.bfloat16)         # (8, 128)
    w3t = w3.T.astype(jnp.bfloat16)                                  # (128, 256)
    wfct = jnp.zeros((hidden, NC_PAD), jnp.float32)
    wfct = wfct.at[:, :nc].set(wfc.T).astype(jnp.bfloat16)           # (256, 128)
    bfcp = jnp.zeros((1, NC_PAD), jnp.float32).at[0, :nc].set(bfc)   # (1, 128)
    return (w21t, w3t, wfct, bfcp)


@functools.partial(jax.jit, static_argnums=(2, 3))
def vndgcnn_forward(x, prepped, k, num_classes):
    w21t, w3t, wfct, bfcp = prepped
    B, D, N = x.shape
    NB = k + 1
    m_rows = B * NB * DP
    fc_rows = B * 2 * DP

    flops = 2 * (m_rows * DP * w21t.shape[1]
                 + m_rows * w3t.shape[0] * w3t.shape[1]
                 + fc_rows * wfct.shape[0] * wfct.shape[1]
                 + B * NB * D * N * N)                 # tiny kNN/gather matmuls
    bytes_accessed = (x.size * 4 + w21t.size * 2 + w3t.size * 2
                      + wfct.size * 2 + bfcp.size * 4
                      + B * 2 * D * NC_PAD * 4)

    out = pl.pallas_call(
        functools.partial(_vndgcnn_kernel, k=k),
        out_shape=jax.ShapeDtypeStruct((B, 2 * D, NC_PAD), jnp.float32),
        grid_spec=pltpu.PrefetchScalarGridSpec(
            num_scalar_prefetch=0,
            grid=(1,),           # single step: batch folded into the stacked M
            in_specs=[
                pl.BlockSpec((B, D, N), lambda i: (0, 0, 0)),
                pl.BlockSpec(w21t.shape, lambda i: (0, 0)),
                pl.BlockSpec(w3t.shape, lambda i: (0, 0)),
                pl.BlockSpec(wfct.shape, lambda i: (0, 0)),
                pl.BlockSpec(bfcp.shape, lambda i: (0, 0)),
            ],
            out_specs=pl.BlockSpec((B, 2 * D, NC_PAD), lambda i: (0, 0, 0)),
            scratch_shapes=[
                pltpu.VMEM((m_rows, DP), jnp.float32),             # diff stack
                pltpu.VMEM((fc_rows, w3t.shape[1]), jnp.float32),  # fc operand
            ],
        ),
        compiler_params=pltpu.CompilerParams(
            dimension_semantics=("arbitrary",)),
        cost_estimate=pl.CostEstimate(
            flops=int(flops), transcendentals=0,
            bytes_accessed=int(bytes_accessed)),
    )(x, w21t, w3t, wfct, bfcp)

    # TODO(synk): the reference does x.view(B, -1) (-> (B, 2*D*256)) followed
    # by nn.Linear(256, num_classes), which is shape-inconsistent for every
    # input that reaches this point; the fc is applied on the trailing 256-dim
    # instead, yielding (B, 2*D, num_classes).
    return out[:, :, :num_classes]


if __name__ == "__main__":
    B, D, N, K, NUM_CLASSES = 2, 6, 6, 4, 10   # literal semantics need D == N == 6

    key = jax.random.PRNGKey(0)
    kx, k1, k2, k3, k4, k5 = jax.random.split(key, 6)
    x = jax.random.normal(kx, (B, D, N), dtype=jnp.float32)

    # Deterministic synthetic parameters (shapes from VNDGCNN.__init__)
    w1 = 0.1 * jax.random.normal(k1, (64, 6), dtype=jnp.float32)
    w2 = 0.1 * jax.random.normal(k2, (128, 64), dtype=jnp.float32)
    w3 = 0.1 * jax.random.normal(k3, (256, 128), dtype=jnp.float32)
    wfc = 0.1 * jax.random.normal(k4, (NUM_CLASSES, 256), dtype=jnp.float32)
    bfc = 0.1 * jax.random.normal(k5, (NUM_CLASSES,), dtype=jnp.float32)
    params = (w1, w2, w3, wfc, bfc)

    prepped = prepare_params(params)                 # one-time weight prep
    out = vndgcnn_forward(x, prepped, K, NUM_CLASSES)
    out = jax.block_until_ready(out)

    ref = vndgcnn_reference(x, params, K)
    assert out.shape == (B, 2 * D, NUM_CLASSES), out.shape
    assert bool(jnp.all(jnp.isfinite(out)))
    err = float(jnp.max(jnp.abs(out - ref)))
    assert bool(jnp.allclose(out, ref, rtol=2e-2, atol=2e-2)), err

    print("KERNEL_OK")
</pallas_src>

<mosaic_0001>
module attributes {stable_mosaic.version = 11 : i64} {
  func.func @_vndgcnn_kernel(%arg0: i32, %arg1: memref<2x6x6xf32, #tpu.memory_space<vmem>>, %arg2: memref<8x128xbf16, #tpu.memory_space<vmem>>, %arg3: memref<128x256xbf16, #tpu.memory_space<vmem>>, %arg4: memref<256x128xbf16, #tpu.memory_space<vmem>>, %arg5: memref<1x128xf32, #tpu.memory_space<vmem>>, %arg6: memref<2x12x128xf32, #tpu.memory_space<vmem>>, %arg7: memref<80x8xf32, #tpu.memory_space<vmem>>, %arg8: memref<32x256xf32, #tpu.memory_space<vmem>>) attributes {dimension_semantics = [#tpu.dimension_semantics<arbitrary>], iteration_bounds = array<i64: 1>, scalar_prefetch = 0 : i64, scratch_operands = 2 : i64, tpu.core_type = #tpu.core_type<tc>, window_params = [{pipeline_mode = #tpu.pipeline_mode<synchronous>, transform_indices = @transform_0, window_bounds = array<i64: 2, 6, 6>}, {pipeline_mode = #tpu.pipeline_mode<synchronous>, transform_indices = @transform_1, window_bounds = array<i64: 8, 128>}, {pipeline_mode = #tpu.pipeline_mode<synchronous>, transform_indices = @transform_2, window_bounds = array<i64: 128, 256>}, {pipeline_mode = #tpu.pipeline_mode<synchronous>, transform_indices = @transform_3, window_bounds = array<i64: 256, 128>}, {pipeline_mode = #tpu.pipeline_mode<synchronous>, transform_indices = @transform_4, window_bounds = array<i64: 1, 128>}, {pipeline_mode = #tpu.pipeline_mode<synchronous>, transform_indices = @transform_5, window_bounds = array<i64: 2, 12, 128>}]} {
    %c0 = arith.constant 0 : index
    %c0_0 = arith.constant 0 : index
    %0 = vector.load %arg2[%c0, %c0_0] : memref<8x128xbf16, #tpu.memory_space<vmem>>, vector<8x128xbf16>
    %c0_1 = arith.constant 0 : index
    %c0_2 = arith.constant 0 : index
    %1 = vector.load %arg3[%c0_1, %c0_2] : memref<128x256xbf16, #tpu.memory_space<vmem>>, vector<128x256xbf16>
    %c0_3 = arith.constant 0 : index
    %c0_4 = arith.constant 0 : index
    %2 = vector.load %arg4[%c0_3, %c0_4] : memref<256x128xbf16, #tpu.memory_space<vmem>>, vector<256x128xbf16>
    %c0_5 = arith.constant 0 : index
    %c0_6 = arith.constant 0 : index
    %3 = vector.load %arg5[%c0_5, %c0_6] : memref<1x128xf32, #tpu.memory_space<vmem>>, vector<1x128xf32>
    %cst = arith.constant 0.000000e+00 : f32
    %4 = vector.broadcast %cst : f32 to vector<80x8xf32>
    %c0_7 = arith.constant 0 : index
    %c0_8 = arith.constant 0 : index
    %5 = vector.load %arg7[%c0_7, %c0_8] : memref<80x8xf32, #tpu.memory_space<vmem>>, vector<80x8xf32>
    tpu.vector_store %arg7[%c0_7, %c0_8], %4 {strides = array<i32>} : memref<80x8xf32, #tpu.memory_space<vmem>>, vector<80x8xf32>,
    %6 = tpu.iota {dimensions = array<i32: 1>} : vector<6x6xi32>
    %7 = arith.sitofp %6 : vector<6x6xi32> to vector<6x6xf32>
    %c0_9 = arith.constant 0 : index
    %c0_10 = arith.constant 0 : index
    %c0_11 = arith.constant 0 : index
    %8 = vector.load %arg1[%c0_9, %c0_10, %c0_11] : memref<2x6x6xf32, #tpu.memory_space<vmem>>, vector<1x6x6xf32>
    %9 = vector.shape_cast %8 : vector<1x6x6xf32> to vector<6x6xf32>
    %10 = arith.truncf %9 : vector<6x6xf32> to vector<6x6xbf16>
    %cst_12 = arith.constant dense<0.000000e+00> : vector<6x6xf32>
    %11 = tpu.matmul %9, %9, %cst_12 {dimension_numbers = #tpu.dot_dimension_numbers<[1], [1], [0], [0], [0, 0, 1, 0], [], []>} : vector<6x6xf32>, vector<6x6xf32>, vector<6x6xf32> -> vector<6x6xf32>
    %12 = arith.mulf %9, %9 : vector<6x6xf32>
    %cst_13 = arith.constant dense<0.000000e+00> : vector<6xf32>
    %13 = vector.multi_reduction <add>, %12, %cst_13 [0] : vector<6x6xf32> to vector<6xf32>
    %14 = vector.shape_cast %13 : vector<6xf32> to vector<1x6xf32>
    %cst_14 = arith.constant 2.000000e+00 : f32
    %15 = vector.broadcast %cst_14 : f32 to vector<6x6xf32>
    %16 = arith.mulf %15, %11 : vector<6x6xf32>
    %17 = vector.broadcast %14 : vector<1x6xf32> to vector<6x6xf32>
    %18 = arith.subf %16, %17 : vector<6x6xf32>
    %c32 = arith.constant 32 : index
    %c0_15 = arith.constant 0 : index
    %19 = vector.load %arg7[%c32, %c0_15] : memref<80x8xf32, #tpu.memory_space<vmem>>, vector<6x6xf32>
    tpu.vector_store %arg7[%c32, %c0_15], %9 {strides = array<i32>} : memref<80x8xf32, #tpu.memory_space<vmem>>, vector<6x6xf32>,
    %cst_16 = arith.constant dense<0xFF800000> : vector<6xf32>
    %20 = vector.multi_reduction <maximumf>, %18, %cst_16 [1] : vector<6x6xf32> to vector<6xf32>
    %21 = vector.shape_cast %20 : vector<6xf32> to vector<6x1xf32>
    %22 = vector.broadcast %21 : vector<6x1xf32> to vector<6x6xf32>
    %23 = arith.cmpf oge, %18, %22 : vector<6x6xf32>
    %cst_17 = arith.constant 6.000000e+00 : f32
    %24 = vector.broadcast %cst_17 : f32 to vector<6x6xf32>
    %25 = arith.select %23, %7, %24 : vector<6x6xi1>, vector<6x6xf32>
    %cst_18 = arith.constant dense<0x7F800000> : vector<6xf32>
    %26 = vector.multi_reduction <minimumf>, %25, %cst_18 [1] : vector<6x6xf32> to vector<6xf32>
    %27 = vector.shape_cast %26 : vector<6xf32> to vector<6x1xf32>
    %28 = vector.broadcast %27 : vector<6x1xf32> to vector<6x6xf32>
    %29 = arith.cmpf oeq, %7, %28 : vector<6x6xf32>
    %30 = arith.extui %29 : vector<6x6xi1> to vector<6x6xi32>
    %31 = arith.sitofp %30 : vector<6x6xi32> to vector<6x6xf32>
    %32 = arith.truncf %31 : vector<6x6xf32> to vector<6x6xbf16>
    %cst_19 = arith.constant dense<0.000000e+00> : vector<6x6xf32>
    %33 = tpu.matmul %10, %32, %cst_19 {dimension_numbers = #tpu.dot_dimension_numbers<[1], [1], [0], [0], [0, 0, 1, 0], [], []>} : vector<6x6xbf16>, vector<6x6xbf16>, vector<6x6xf32> -> vector<6x6xf32>
    %34 = arith.subf %33, %9 : vector<6x6xf32>
    %c0_20 = arith.constant 0 : index
    %c0_21 = arith.constant 0 : index
    %35 = vector.load %arg7[%c0_20, %c0_21] : memref<80x8xf32, #tpu.memory_space<vmem>>, vector<6x6xf32>
    tpu.vector_store %arg7[%c0_20, %c0_21], %34 {strides = array<i32>} : memref<80x8xf32, #tpu.memory_space<vmem>>, vector<6x6xf32>,
    %cst_22 = arith.constant 0xFF800000 : f32
    %36 = vector.broadcast %cst_22 : f32 to vector<6x6xf32>
    %37 = arith.select %29, %36, %18 : vector<6x6xi1>, vector<6x6xf32>
    %cst_23 = arith.constant dense<0xFF800000> : vector<6xf32>
    %38 = vector.multi_reduction <maximumf>, %37, %cst_23 [1] : vector<6x6xf32> to vector<6xf32>
    %39 = vector.shape_cast %38 : vector<6xf32> to vector<6x1xf32>
    %40 = vector.broadcast %39 : vector<6x1xf32> to vector<6x6xf32>
    %41 = arith.cmpf oge, %37, %40 : vector<6x6xf32>
    %cst_24 = arith.constant 6.000000e+00 : f32
    %42 = vector.broadcast %cst_24 : f32 to vector<6x6xf32>
    %43 = arith.select %41, %7, %42 : vector<6x6xi1>, vector<6x6xf32>
    %cst_25 = arith.constant dense<0x7F800000> : vector<6xf32>
    %44 = vector.multi_reduction <minimumf>, %43, %cst_25 [1] : vector<6x6xf32> to vector<6xf32>
    %45 = vector.shape_cast %44 : vector<6xf32> to vector<6x1xf32>
    %46 = vector.broadcast %45 : vector<6x1xf32> to vector<6x6xf32>
    %47 = arith.cmpf oeq, %7, %46 : vector<6x6xf32>
    %48 = arith.extui %47 : vector<6x6xi1> to vector<6x6xi32>
    %49 = arith.sitofp %48 : vector<6x6xi32> to vector<6x6xf32>
    %50 = arith.truncf %49 : vector<6x6xf32> to vector<6x6xbf16>
    %cst_26 = arith.constant dense<0.000000e+00> : vector<6x6xf32>
    %51 = tpu.matmul %10, %50, %cst_26 {dimension_numbers = #tpu.dot_dimension_numbers<[1], [1], [0], [0], [0, 0, 1, 0], [], []>} : vector<6x6xbf16>, vector<6x6xbf16>, vector<6x6xf32> -> vector<6x6xf32>
    %52 = arith.subf %51, %9 : vector<6x6xf32>
    %c8 = arith.constant 8 : index
    %c0_27 = arith.constant 0 : index
    %53 = vector.load %arg7[%c8, %c0_27] : memref<80x8xf32, #tpu.memory_space<vmem>>, vector<6x6xf32>
    tpu.vector_store %arg7[%c8, %c0_27], %52 {strides = array<i32>} : memref<80x8xf32, #tpu.memory_space<vmem>>, vector<6x6xf32>,
    %cst_28 = arith.constant 0xFF800000 : f32
    %54 = vector.broadcast %cst_28 : f32 to vector<6x6xf32>
    %55 = arith.select %47, %54, %37 : vector<6x6xi1>, vector<6x6xf32>
    %cst_29 = arith.constant dense<0xFF800000> : vector<6xf32>
    %56 = vector.multi_reduction <maximumf>, %55, %cst_29 [1] : vector<6x6xf32> to vector<6xf32>
    %57 = vector.shape_cast %56 : vector<6xf32> to vector<6x1xf32>
    %58 = vector.broadcast %57 : vector<6x1xf32> to vector<6x6xf32>
    %59 = arith.cmpf oge, %55, %58 : vector<6x6xf32>
    %cst_30 = arith.constant 6.000000e+00 : f32
    %60 = vector.broadcast %cst_30 : f32 to vector<6x6xf32>
    %61 = arith.select %59, %7, %60 : vector<6x6xi1>, vector<6x6xf32>
    %cst_31 = arith.constant dense<0x7F800000> : vector<6xf32>
    %62 = vector.multi_reduction <minimumf>, %61, %cst_31 [1] : vector<6x6xf32> to vector<6xf32>
    %63 = vector.shape_cast %62 : vector<6xf32> to vector<6x1xf32>
    %64 = vector.broadcast %63 : vector<6x1xf32> to vector<6x6xf32>
    %65 = arith.cmpf oeq, %7, %64 : vector<6x6xf32>
    %66 = arith.extui %65 : vector<6x6xi1> to vector<6x6xi32>
    %67 = arith.sitofp %66 : vector<6x6xi32> to vector<6x6xf32>
    %68 = arith.truncf %67 : vector<6x6xf32> to vector<6x6xbf16>
    %cst_32 = arith.constant dense<0.000000e+00> : vector<6x6xf32>
    %69 = tpu.matmul %10, %68, %cst_32 {dimension_numbers = #tpu.dot_dimension_numbers<[1], [1], [0], [0], [0, 0, 1, 0], [], []>} : vector<6x6xbf16>, vector<6x6xbf16>, vector<6x6xf32> -> vector<6x6xf32>
    %70 = arith.subf %69, %9 : vector<6x6xf32>
    %c16 = arith.constant 16 : index
    %c0_33 = arith.constant 0 : index
    %71 = vector.load %arg7[%c16, %c0_33] : memref<80x8xf32, #tpu.memory_space<vmem>>, vector<6x6xf32>
    tpu.vector_store %arg7[%c16, %c0_33], %70 {strides = array<i32>} : memref<80x8xf32, #tpu.memory_space<vmem>>, vector<6x6xf32>,
    %cst_34 = arith.constant 0xFF800000 : f32
    %72 = vector.broadcast %cst_34 : f32 to vector<6x6xf32>
    %73 = arith.select %65, %72, %55 : vector<6x6xi1>, vector<6x6xf32>
    %cst_35 = arith.constant dense<0xFF800000> : vector<6xf32>
    %74 = vector.multi_reduction <maximumf>, %73, %cst_35 [1] : vector<6x6xf32> to vector<6xf32>
    %75 = vector.shape_cast %74 : vector<6xf32> to vector<6x1xf32>
    %76 = vector.broadcast %75 : vector<6x1xf32> to vector<6x6xf32>
    %77 = arith.cmpf oge, %73, %76 : vector<6x6xf32>
    %cst_36 = arith.constant 6.000000e+00 : f32
    %78 = vector.broadcast %cst_36 : f32 to vector<6x6xf32>
    %79 = arith.select %77, %7, %78 : vector<6x6xi1>, vector<6x6xf32>
    %cst_37 = arith.constant dense<0x7F800000> : vector<6xf32>
    %80 = vector.multi_reduction <minimumf>, %79, %cst_37 [1] : vector<6x6xf32> to vector<6xf32>
    %81 = vector.shape_cast %80 : vector<6xf32> to vector<6x1xf32>
    %82 = vector.broadcast %81 : vector<6x1xf32> to vector<6x6xf32>
    %83 = arith.cmpf oeq, %7, %82 : vector<6x6xf32>
    %84 = arith.extui %83 : vector<6x6xi1> to vector<6x6xi32>
    %85 = arith.sitofp %84 : vector<6x6xi32> to vector<6x6xf32>
    %86 = arith.truncf %85 : vector<6x6xf32> to vector<6x6xbf16>
    %cst_38 = arith.constant dense<0.000000e+00> : vector<6x6xf32>
    %87 = tpu.matmul %10, %86, %cst_38 {dimension_numbers = #tpu.dot_dimension_numbers<[1], [1], [0], [0], [0, 0, 1, 0], [], []>} : vector<6x6xbf16>, vector<6x6xbf16>, vector<6x6xf32> -> vector<6x6xf32>
    %88 = arith.subf %87, %9 : vector<6x6xf32>
    %c24 = arith.constant 24 : index
    %c0_39 = arith.constant 0 : index
    %89 = vector.load %arg7[%c24, %c0_39] : memref<80x8xf32, #tpu.memory_space<vmem>>, vector<6x6xf32>
    tpu.vector_store %arg7[%c24, %c0_39], %88 {strides = array<i32>} : memref<80x8xf32, #tpu.memory_space<vmem>>, vector<6x6xf32>,
    %c1 = arith.constant 1 : index
    %c0_40 = arith.constant 0 : index
    %c0_41 = arith.constant 0 : index
    %90 = vector.load %arg1[%c1, %c0_40, %c0_41] : memref<2x6x6xf32, #tpu.memory_space<vmem>>, vector<1x6x6xf32>
    %91 = vector.shape_cast %90 : vector<1x6x6xf32> to vector<6x6xf32>
    %92 = arith.truncf %91 : vector<6x6xf32> to vector<6x6xbf16>
    %cst_42 = arith.constant dense<0.000000e+00> : vector<6x6xf32>
    %93 = tpu.matmul %91, %91, %cst_42 {dimension_numbers = #tpu.dot_dimension_numbers<[1], [1], [0], [0], [0, 0, 1, 0], [], []>} : vector<6x6xf32>, vector<6x6xf32>, vector<6x6xf32> -> vector<6x6xf32>
    %94 = arith.mulf %91, %91 : vector<6x6xf32>
    %cst_43 = arith.constant dense<0.000000e+00> : vector<6xf32>
    %95 = vector.multi_reduction <add>, %94, %cst_43 [0] : vector<6x6xf32> to vector<6xf32>
    %96 = vector.shape_cast %95 : vector<6xf32> to vector<1x6xf32>
    %cst_44 = arith.constant 2.000000e+00 : f32
    %97 = vector.broadcast %cst_44 : f32 to vector<6x6xf32>
    %98 = arith.mulf %97, %93 : vector<6x6xf32>
    %99 = vector.broadcast %96 : vector<1x6xf32> to vector<6x6xf32>
    %100 = arith.subf %98, %99 : vector<6x6xf32>
    %c72 = arith.constant 72 : index
    %c0_45 = arith.constant 0 : index
    %101 = vector.load %arg7[%c72, %c0_45] : memref<80x8xf32, #tpu.memory_space<vmem>>, vector<6x6xf32>
    tpu.vector_store %arg7[%c72, %c0_45], %91 {strides = array<i32>} : memref<80x8xf32, #tpu.memory_space<vmem>>, vector<6x6xf32>,
    %cst_46 = arith.constant dense<0xFF800000> : vector<6xf32>
    %102 = vector.multi_reduction <maximumf>, %100, %cst_46 [1] : vector<6x6xf32> to vector<6xf32>
    %103 = vector.shape_cast %102 : vector<6xf32> to vector<6x1xf32>
    %104 = vector.broadcast %103 : vector<6x1xf32> to vector<6x6xf32>
    %105 = arith.cmpf oge, %100, %104 : vector<6x6xf32>
    %cst_47 = arith.constant 6.000000e+00 : f32
    %106 = vector.broadcast %cst_47 : f32 to vector<6x6xf32>
    %107 = arith.select %105, %7, %106 : vector<6x6xi1>, vector<6x6xf32>
    %cst_48 = arith.constant dense<0x7F800000> : vector<6xf32>
    %108 = vector.multi_reduction <minimumf>, %107, %cst_48 [1] : vector<6x6xf32> to vector<6xf32>
    %109 = vector.shape_cast %108 : vector<6xf32> to vector<6x1xf32>
    %110 = vector.broadcast %109 : vector<6x1xf32> to vector<6x6xf32>
    %111 = arith.cmpf oeq, %7, %110 : vector<6x6xf32>
    %112 = arith.extui %111 : vector<6x6xi1> to vector<6x6xi32>
    %113 = arith.sitofp %112 : vector<6x6xi32> to vector<6x6xf32>
    %114 = arith.truncf %113 : vector<6x6xf32> to vector<6x6xbf16>
    %cst_49 = arith.constant dense<0.000000e+00> : vector<6x6xf32>
    %115 = tpu.matmul %92, %114, %cst_49 {dimension_numbers = #tpu.dot_dimension_numbers<[1], [1], [0], [0], [0, 0, 1, 0], [], []>} : vector<6x6xbf16>, vector<6x6xbf16>, vector<6x6xf32> -> vector<6x6xf32>
    %116 = arith.subf %115, %91 : vector<6x6xf32>
    %c40 = arith.constant 40 : index
    %c0_50 = arith.constant 0 : index
    %117 = vector.load %arg7[%c40, %c0_50] : memref<80x8xf32, #tpu.memory_space<vmem>>, vector<6x6xf32>
    tpu.vector_store %arg7[%c40, %c0_50], %116 {strides = array<i32>} : memref<80x8xf32, #tpu.memory_space<vmem>>, vector<6x6xf32>,
    %cst_51 = arith.constant 0xFF800000 : f32
    %118 = vector.broadcast %cst_51 : f32 to vector<6x6xf32>
    %119 = arith.select %111, %118, %100 : vector<6x6xi1>, vector<6x6xf32>
    %cst_52 = arith.constant dense<0xFF800000> : vector<6xf32>
    %120 = vector.multi_reduction <maximumf>, %119, %cst_52 [1] : vector<6x6xf32> to vector<6xf32>
    %121 = vector.shape_cast %120 : vector<6xf32> to vector<6x1xf32>
    %122 = vector.broadcast %121 : vector<6x1xf32> to vector<6x6xf32>
    %123 = arith.cmpf oge, %119, %122 : vector<6x6xf32>
    %cst_53 = arith.constant 6.000000e+00 : f32
    %124 = vector.broadcast %cst_53 : f32 to vector<6x6xf32>
    %125 = arith.select %123, %7, %124 : vector<6x6xi1>, vector<6x6xf32>
    %cst_54 = arith.constant dense<0x7F800000> : vector<6xf32>
    %126 = vector.multi_reduction <minimumf>, %125, %cst_54 [1] : vector<6x6xf32> to vector<6xf32>
    %127 = vector.shape_cast %126 : vector<6xf32> to vector<6x1xf32>
    %128 = vector.broadcast %127 : vector<6x1xf32> to vector<6x6xf32>
    %129 = arith.cmpf oeq, %7, %128 : vector<6x6xf32>
    %130 = arith.extui %129 : vector<6x6xi1> to vector<6x6xi32>
    %131 = arith.sitofp %130 : vector<6x6xi32> to vector<6x6xf32>
    %132 = arith.truncf %131 : vector<6x6xf32> to vector<6x6xbf16>
    %cst_55 = arith.constant dense<0.000000e+00> : vector<6x6xf32>
    %133 = tpu.matmul %92, %132, %cst_55 {dimension_numbers = #tpu.dot_dimension_numbers<[1], [1], [0], [0], [0, 0, 1, 0], [], []>} : vector<6x6xbf16>, vector<6x6xbf16>, vector<6x6xf32> -> vector<6x6xf32>
    %134 = arith.subf %133, %91 : vector<6x6xf32>
    %c48 = arith.constant 48 : index
    %c0_56 = arith.constant 0 : index
    %135 = vector.load %arg7[%c48, %c0_56] : memref<80x8xf32, #tpu.memory_space<vmem>>, vector<6x6xf32>
    tpu.vector_store %arg7[%c48, %c0_56], %134 {strides = array<i32>} : memref<80x8xf32, #tpu.memory_space<vmem>>, vector<6x6xf32>,
    %cst_57 = arith.constant 0xFF800000 : f32
    %136 = vector.broadcast %cst_57 : f32 to vector<6x6xf32>
    %137 = arith.select %129, %136, %119 : vector<6x6xi1>, vector<6x6xf32>
    %cst_58 = arith.constant dense<0xFF800000> : vector<6xf32>
    %138 = vector.multi_reduction <maximumf>, %137, %cst_58 [1] : vector<6x6xf32> to vector<6xf32>
    %139 = vector.shape_cast %138 : vector<6xf32> to vector<6x1xf32>
    %140 = vector.broadcast %139 : vector<6x1xf32> to vector<6x6xf32>
    %141 = arith.cmpf oge, %137, %140 : vector<6x6xf32>
    %cst_59 = arith.constant 6.000000e+00 : f32
    %142 = vector.broadcast %cst_59 : f32 to vector<6x6xf32>
    %143 = arith.select %141, %7, %142 : vector<6x6xi1>, vector<6x6xf32>
    %cst_60 = arith.constant dense<0x7F800000> : vector<6xf32>
    %144 = vector.multi_reduction <minimumf>, %143, %cst_60 [1] : vector<6x6xf32> to vector<6xf32>
    %145 = vector.shape_cast %144 : vector<6xf32> to vector<6x1xf32>
    %146 = vector.broadcast %145 : vector<6x1xf32> to vector<6x6xf32>
    %147 = arith.cmpf oeq, %7, %146 : vector<6x6xf32>
    %148 = arith.extui %147 : vector<6x6xi1> to vector<6x6xi32>
    %149 = arith.sitofp %148 : vector<6x6xi32> to vector<6x6xf32>
    %150 = arith.truncf %149 : vector<6x6xf32> to vector<6x6xbf16>
    %cst_61 = arith.constant dense<0.000000e+00> : vector<6x6xf32>
    %151 = tpu.matmul %92, %150, %cst_61 {dimension_numbers = #tpu.dot_dimension_numbers<[1], [1], [0], [0], [0, 0, 1, 0], [], []>} : vector<6x6xbf16>, vector<6x6xbf16>, vector<6x6xf32> -> vector<6x6xf32>
    %152 = arith.subf %151, %91 : vector<6x6xf32>
    %c56 = arith.constant 56 : index
    %c0_62 = arith.constant 0 : index
    %153 = vector.load %arg7[%c56, %c0_62] : memref<80x8xf32, #tpu.memory_space<vmem>>, vector<6x6xf32>
    tpu.vector_store %arg7[%c56, %c0_62], %152 {strides = array<i32>} : memref<80x8xf32, #tpu.memory_space<vmem>>, vector<6x6xf32>,
    %cst_63 = arith.constant 0xFF800000 : f32
    %154 = vector.broadcast %cst_63 : f32 to vector<6x6xf32>
    %155 = arith.select %147, %154, %137 : vector<6x6xi1>, vector<6x6xf32>
    %cst_64 = arith.constant dense<0xFF800000> : vector<6xf32>
    %156 = vector.multi_reduction <maximumf>, %155, %cst_64 [1] : vector<6x6xf32> to vector<6xf32>
    %157 = vector.shape_cast %156 : vector<6xf32> to vector<6x1xf32>
    %158 = vector.broadcast %157 : vector<6x1xf32> to vector<6x6xf32>
    %159 = arith.cmpf oge, %155, %158 : vector<6x6xf32>
    %cst_65 = arith.constant 6.000000e+00 : f32
    %160 = vector.broadcast %cst_65 : f32 to vector<6x6xf32>
    %161 = arith.select %159, %7, %160 : vector<6x6xi1>, vector<6x6xf32>
    %cst_66 = arith.constant dense<0x7F800000> : vector<6xf32>
    %162 = vector.multi_reduction <minimumf>, %161, %cst_66 [1] : vector<6x6xf32> to vector<6xf32>
    %163 = vector.shape_cast %162 : vector<6xf32> to vector<6x1xf32>
    %164 = vector.broadcast %163 : vector<6x1xf32> to vector<6x6xf32>
    %165 = arith.cmpf oeq, %7, %164 : vector<6x6xf32>
    %166 = arith.extui %165 : vector<6x6xi1> to vector<6x6xi32>
    %167 = arith.sitofp %166 : vector<6x6xi32> to vector<6x6xf32>
    %168 = arith.truncf %167 : vector<6x6xf32> to vector<6x6xbf16>
    %cst_67 = arith.constant dense<0.000000e+00> : vector<6x6xf32>
    %169 = tpu.matmul %92, %168, %cst_67 {dimension_numbers = #tpu.dot_dimension_numbers<[1], [1], [0], [0], [0, 0, 1, 0], [], []>} : vector<6x6xbf16>, vector<6x6xbf16>, vector<6x6xf32> -> vector<6x6xf32>
    %170 = arith.subf %169, %91 : vector<6x6xf32>
    %c64 = arith.constant 64 : index
    %c0_68 = arith.constant 0 : index
    %171 = vector.load %arg7[%c64, %c0_68] : memref<80x8xf32, #tpu.memory_space<vmem>>, vector<6x6xf32>
    tpu.vector_store %arg7[%c64, %c0_68], %170 {strides = array<i32>} : memref<80x8xf32, #tpu.memory_space<vmem>>, vector<6x6xf32>,
    %c0_69 = arith.constant 0 : index
    %c0_70 = arith.constant 0 : index
    %172 = vector.load %arg7[%c0_69, %c0_70] : memref<80x8xf32, #tpu.memory_space<vmem>>, vector<80x8xf32>
    %173 = arith.truncf %172 : vector<80x8xf32> to vector<80x8xbf16>
    %cst_71 = arith.constant dense<0.000000e+00> : vector<80x128xf32>
    %174 = tpu.matmul %173, %0, %cst_71 {dimension_numbers = #tpu.dot_dimension_numbers<[1], [0], [0], [1], [0, 0, 1, 1], [], []>} : vector<80x8xbf16>, vector<8x128xbf16>, vector<80x128xf32> -> vector<80x128xf32>
    %cst_72 = arith.constant 0.000000e+00 : f32
    %175 = vector.broadcast %cst_72 : f32 to vector<80x128xf32>
    %176 = arith.maximumf %174, %175 : vector<80x128xf32>
    %177 = arith.truncf %176 : vector<80x128xf32> to vector<80x128xbf16>
    %cst_73 = arith.constant dense<0.000000e+00> : vector<80x256xf32>
    %178 = tpu.matmul %177, %1, %cst_73 {dimension_numbers = #tpu.dot_dimension_numbers<[1], [0], [0], [1], [0, 0, 1, 1], [], []>} : vector<80x128xbf16>, vector<128x256xbf16>, vector<80x256xf32> -> vector<80x256xf32>
    %cst_74 = arith.constant 0.000000e+00 : f32
    %179 = vector.broadcast %cst_74 : f32 to vector<80x256xf32>
    %180 = arith.maximumf %178, %179 : vector<80x256xf32>
    %181 = vector.extract_strided_slice %180 {offsets = [0, 0], sizes = [8, 256], strides = [1, 1]} : vector<80x256xf32> to vector<8x256xf32>
    %182 = vector.extract_strided_slice %180 {offsets = [8, 0], sizes = [8, 256], strides = [1, 1]} : vector<80x256xf32> to vector<8x256xf32>
    %183 = arith.maximumf %181, %182 : vector<8x256xf32>
    %184 = vector.extract_strided_slice %180 {offsets = [16, 0], sizes = [8, 256], strides = [1, 1]} : vector<80x256xf32> to vector<8x256xf32>
    %185 = arith.maximumf %183, %184 : vector<8x256xf32>
    %186 = vector.extract_strided_slice %180 {offsets = [24, 0], sizes = [8, 256], strides = [1, 1]} : vector<80x256xf32> to vector<8x256xf32>
    %187 = arith.maximumf %185, %186 : vector<8x256xf32>
    %c0_75 = arith.constant 0 : index
    %c0_76 = arith.constant 0 : index
    %188 = vector.load %arg8[%c0_75, %c0_76] : memref<32x256xf32, #tpu.memory_space<vmem>>, vector<8x256xf32>
    tpu.vector_store %arg8[%c0_75, %c0_76], %187 {strides = array<i32>} : memref<32x256xf32, #tpu.memory_space<vmem>>, vector<8x256xf32>,
    %189 = vector.extract_strided_slice %180 {offsets = [32, 0], sizes = [8, 256], strides = [1, 1]} : vector<80x256xf32> to vector<8x256xf32>
    %c8_77 = arith.constant 8 : index
    %c0_78 = arith.constant 0 : index
    %190 = vector.load %arg8[%c8_77, %c0_78] : memref<32x256xf32, #tpu.memory_space<vmem>>, vector<8x256xf32>
    tpu.vector_store %arg8[%c8_77, %c0_78], %189 {strides = array<i32>} : memref<32x256xf32, #tpu.memory_space<vmem>>, vector<8x256xf32>,
    %191 = vector.extract_strided_slice %180 {offsets = [40, 0], sizes = [8, 256], strides = [1, 1]} : vector<80x256xf32> to vector<8x256xf32>
    %192 = vector.extract_strided_slice %180 {offsets = [48, 0], sizes = [8, 256], strides = [1, 1]} : vector<80x256xf32> to vector<8x256xf32>
    %193 = arith.maximumf %191, %192 : vector<8x256xf32>
    %194 = vector.extract_strided_slice %180 {offsets = [56, 0], sizes = [8, 256], strides = [1, 1]} : vector<80x256xf32> to vector<8x256xf32>
    %195 = arith.maximumf %193, %194 : vector<8x256xf32>
    %196 = vector.extract_strided_slice %180 {offsets = [64, 0], sizes = [8, 256], strides = [1, 1]} : vector<80x256xf32> to vector<8x256xf32>
    %197 = arith.maximumf %195, %196 : vector<8x256xf32>
    %c16_79 = arith.constant 16 : index
    %c0_80 = arith.constant 0 : index
    %198 = vector.load %arg8[%c16_79, %c0_80] : memref<32x256xf32, #tpu.memory_space<vmem>>, vector<8x256xf32>
    tpu.vector_store %arg8[%c16_79, %c0_80], %197 {strides = array<i32>} : memref<32x256xf32, #tpu.memory_space<vmem>>, vector<8x256xf32>,
    %199 = vector.extract_strided_slice %180 {offsets = [72, 0], sizes = [8, 256], strides = [1, 1]} : vector<80x256xf32> to vector<8x256xf32>
    %c24_81 = arith.constant 24 : index
    %c0_82 = arith.constant 0 : index
    %200 = vector.load %arg8[%c24_81, %c0_82] : memref<32x256xf32, #tpu.memory_space<vmem>>, vector<8x256xf32>
    tpu.vector_store %arg8[%c24_81, %c0_82], %199 {strides = array<i32>} : memref<32x256xf32, #tpu.memory_space<vmem>>, vector<8x256xf32>,
    %c0_83 = arith.constant 0 : index
    %c0_84 = arith.constant 0 : index
    %201 = vector.load %arg8[%c0_83, %c0_84] : memref<32x256xf32, #tpu.memory_space<vmem>>, vector<32x256xf32>
    %202 = arith.truncf %201 : vector<32x256xf32> to vector<32x256xbf16>
    %cst_85 = arith.constant dense<0.000000e+00> : vector<32x128xf32>
    %203 = tpu.matmul %202, %2, %cst_85 {dimension_numbers = #tpu.dot_dimension_numbers<[1], [0], [0], [1], [0, 0, 1, 1], [], []>} : vector<32x256xbf16>, vector<256x128xbf16>, vector<32x128xf32> -> vector<32x128xf32>
    %204 = vector.broadcast %3 : vector<1x128xf32> to vector<32x128xf32>
    %205 = arith.addf %203, %204 : vector<32x128xf32>
    %206 = vector.extract_strided_slice %205 {offsets = [0, 0], sizes = [6, 128], strides = [1, 1]} : vector<32x128xf32> to vector<6x128xf32>
    %c0_86 = arith.constant 0 : index
    %c0_87 = arith.constant 0 : index
    %c0_88 = arith.constant 0 : index
    %207 = vector.load %arg6[%c0_86, %c0_87, %c0_88] : memref<2x12x128xf32, #tpu.memory_space<vmem>>, vector<1x6x128xf32>
    %208 = vector.shape_cast %207 : vector<1x6x128xf32> to vector<6x128xf32>
    %209 = vector.shape_cast %206 : vector<6x128xf32> to vector<1x6x128xf32>
    tpu.vector_store %arg6[%c0_86, %c0_87, %c0_88], %209 {strides = array<i32>} : memref<2x12x128xf32, #tpu.memory_space<vmem>>, vector<1x6x128xf32>,
    %210 = vector.extract_strided_slice %205 {offsets = [8, 0], sizes = [6, 128], strides = [1, 1]} : vector<32x128xf32> to vector<6x128xf32>
    %c0_89 = arith.constant 0 : index
    %c6 = arith.constant 6 : index
    %c0_90 = arith.constant 0 : index
    %211 = vector.load %arg6[%c0_89, %c6, %c0_90] : memref<2x12x128xf32, #tpu.memory_space<vmem>>, vector<1x6x128xf32>
    %212 = vector.shape_cast %211 : vector<1x6x128xf32> to vector<6x128xf32>
    %213 = vector.shape_cast %210 : vector<6x128xf32> to vector<1x6x128xf32>
    tpu.vector_store %arg6[%c0_89, %c6, %c0_90], %213 {strides = array<i32>} : memref<2x12x128xf32, #tpu.memory_space<vmem>>, vector<1x6x128xf32>,
    %214 = vector.extract_strided_slice %205 {offsets = [16, 0], sizes = [6, 128], strides = [1, 1]} : vector<32x128xf32> to vector<6x128xf32>
    %c1_91 = arith.constant 1 : index
    %c0_92 = arith.constant 0 : index
    %c0_93 = arith.constant 0 : index
    %215 = vector.load %arg6[%c1_91, %c0_92, %c0_93] : memref<2x12x128xf32, #tpu.memory_space<vmem>>, vector<1x6x128xf32>
    %216 = vector.shape_cast %215 : vector<1x6x128xf32> to vector<6x128xf32>
    %217 = vector.shape_cast %214 : vector<6x128xf32> to vector<1x6x128xf32>
    tpu.vector_store %arg6[%c1_91, %c0_92, %c0_93], %217 {strides = array<i32>} : memref<2x12x128xf32, #tpu.memory_space<vmem>>, vector<1x6x128xf32>,
    %218 = vector.extract_strided_slice %205 {offsets = [24, 0], sizes = [6, 128], strides = [1, 1]} : vector<32x128xf32> to vector<6x128xf32>
    %c1_94 = arith.constant 1 : index
    %c6_95 = arith.constant 6 : index
    %c0_96 = arith.constant 0 : index
    %219 = vector.load %arg6[%c1_94, %c6_95, %c0_96] : memref<2x12x128xf32, #tpu.memory_space<vmem>>, vector<1x6x128xf32>
    %220 = vector.shape_cast %219 : vector<1x6x128xf32> to vector<6x128xf32>
    %221 = vector.shape_cast %218 : vector<6x128xf32> to vector<1x6x128xf32>
    tpu.vector_store %arg6[%c1_94, %c6_95, %c0_96], %221 {strides = array<i32>} : memref<2x12x128xf32, #tpu.memory_space<vmem>>, vector<1x6x128xf32>,
    return
  }
  func.func @transform_0(%arg0: i32) -> (i32, i32, i32) {
    %c0_i32 = arith.constant 0 : i32
    %c0_i32_0 = arith.constant 0 : i32
    %c0_i32_1 = arith.constant 0 : i32
    %c0_i32_2 = arith.constant 0 : i32
    return %c0_i32, %c0_i32_0, %c0_i32_1 : i32, i32, i32
  }
  func.func @transform_1(%arg0: i32) -> (i32, i32) {
    %c0_i32 = arith.constant 0 : i32
    %c0_i32_0 = arith.constant 0 : i32
    %c0_i32_1 = arith.constant 0 : i32
    return %c0_i32, %c0_i32_0 : i32, i32
  }
  func.func @transform_2(%arg0: i32) -> (i32, i32) {
    %c0_i32 = arith.constant 0 : i32
    %c0_i32_0 = arith.constant 0 : i32
    %c0_i32_1 = arith.constant 0 : i32
    return %c0_i32, %c0_i32_0 : i32, i32
  }
  func.func @transform_3(%arg0: i32) -> (i32, i32) {
    %c0_i32 = arith.constant 0 : i32
    %c0_i32_0 = arith.constant 0 : i32
    %c0_i32_1 = arith.constant 0 : i32
    return %c0_i32, %c0_i32_0 : i32, i32
  }
  func.func @transform_4(%arg0: i32) -> (i32, i32) {
    %c0_i32 = arith.constant 0 : i32
    %c0_i32_0 = arith.constant 0 : i32
    %c0_i32_1 = arith.constant 0 : i32
    return %c0_i32, %c0_i32_0 : i32, i32
  }
  func.func @transform_5(%arg0: i32) -> (i32, i32, i32) {
    %c0_i32 = arith.constant 0 : i32
    %c0_i32_0 = arith.constant 0 : i32
    %c0_i32_1 = arith.constant 0 : i32
    %c0_i32_2 = arith.constant 0 : i32
    return %c0_i32, %c0_i32_0, %c0_i32_1 : i32, i32, i32
  }
}

</mosaic_0001>

<llo_original>
// kernel: vndgcnn_forward.1
$region0: #{vndgcnn_forward.1}
  #allocation0 [shape = 'u32[]', space=smem, size = 0x4, offset = 0x4, fixed_abs, tag = 'smem constant byte address 0x4 - core index']
  #allocation1 [shape = 'u32[144,128]{1,0:T(1,128)}', space=vmem, size = 0x12000, scoped, tag = 'internal scratch']
  #allocation2 [shape = 'f32[80,8]{1,0:T(8,128)}', space=vmem, size = 0xa000, scoped, tag = 'scratch operand']
  #allocation3 [shape = 'f32[32,256]{1,0:T(8,128)}', space=vmem, size = 0x8000, scoped, tag = 'scratch operand']
  %s0 = inlined_call_operand.vmem [shape: f32[2,6,6], index: 0, kind: input, shape index: {}]
  %s1 = inlined_call_operand.vmem [shape: bf16[8,128], index: 1, kind: input, shape index: {}]
  %s2 = inlined_call_operand.hbm [shape: bf16[128,256], index: 2, kind: input, shape index: {}]
  %s3 = inlined_call_operand.hbm [shape: bf16[256,128], index: 3, kind: input, shape index: {}]
  %s4 = inlined_call_operand.vmem [shape: f32[1,128], index: 4, kind: input, shape index: {}]
  %s5 = inlined_call_operand.vmem [shape: f32[2,12,128], index: 5, kind: output, shape index: {}]
  %s6 = sld [smem:[#allocation0]]
  $region38: #{vndgcnn_forward.1} parent=0
    _
  %s8 = ssub.s32 1, %s6
  %s9 = scalar_select 0, %s8, %s6
  $region1: #{vndgcnn_forward.1} parent=0
    #allocation4 [shape = 'u8[65536]{0}', space=vmem, size = 0x10000, scoped, tag = 'input window, operand 2, single buffered']
    #allocation5 [shape = 's32[1]{0}', space=sflag, size = 0x4, scoped, tag = 'scoped memory for vndgcnn_forward.1']
    #allocation6 [shape = 'u8[65536]{0}', space=vmem, size = 0x10000, scoped, tag = 'input window, operand 3, single buffered']
    #allocation7 [shape = 's32[1]{0}', space=sflag, size = 0x4, scoped, tag = 'scoped memory for vndgcnn_forward.1']
    %10 = vsyncpa [#allocation5], 0
    %11 = vsyncpa [#allocation7], 0
    // Predicated region
    $region2: #{vndgcnn_forward.1} parent=1 // pred_check
      _
    $region3: #{vndgcnn_forward.1} parent=1 // pred_check_branch
      %13 = sbr.rel (0) target = $region5
    $region4: #{vndgcnn_forward.1} parent=1 // pred_region
      _
    $region5: #{vndgcnn_forward.1} parent=1 // pred_fallthru
      _
    // Predicated region
    $region6: #{vndgcnn_forward.1} parent=1 // pred_check
      _
    $region7: #{vndgcnn_forward.1} parent=1 // pred_check_branch
      %15 = sbr.rel (0) target = $region9
    $region8: #{vndgcnn_forward.1} parent=1 // pred_region
      _
    $region9: #{vndgcnn_forward.1} parent=1 // pred_fallthru
      _
    // Predicated region
    $region10: #{vndgcnn_forward.1} parent=1 // pred_check
      _
    $region11: #{vndgcnn_forward.1} parent=1 // pred_check_branch
      %17 = sbr.rel (0) target = $region13
    $region12: #{vndgcnn_forward.1} parent=1 // pred_region
      %s19 = ssub.s32 2048, 2048
      %20 = vsyncadd [#allocation5], %s19
      %s21 = sshll.u32 [#allocation4], 4
      %s22 = int_to_ptr.vmem [resolvable:$true] %s21
      %27 = dma.hbm_to_vmem [thread:$0]  %s2, 2048, %s22, [#allocation5], 128, 128, 8
    $region13: #{vndgcnn_forward.1} parent=1 // pred_fallthru
      _
    // Predicated region
    $region14: #{vndgcnn_forward.1} parent=1 // pred_check
      _
    $region15: #{vndgcnn_forward.1} parent=1 // pred_check_branch
      %29 = sbr.rel (0) target = $region17
    $region16: #{vndgcnn_forward.1} parent=1 // pred_region
      %s31 = ssub.s32 2048, 2048
      %32 = vsyncadd [#allocation7], %s31
      %s33 = sshll.u32 [#allocation6], 4
      %s34 = int_to_ptr.vmem [resolvable:$true] %s33
      %39 = dma.hbm_to_vmem [thread:$0]  %s3, 2048, %s34, [#allocation7], 64, 64, 4
    $region17: #{vndgcnn_forward.1} parent=1 // pred_fallthru
      _
    // Predicated region
    $region18: #{vndgcnn_forward.1} parent=1 // pred_check
      _
    $region19: #{vndgcnn_forward.1} parent=1 // pred_check_branch
      %41 = sbr.rel (0) target = $region21
    $region20: #{vndgcnn_forward.1} parent=1 // pred_region
      _
    $region21: #{vndgcnn_forward.1} parent=1 // pred_fallthru
      _
    // Predicated region
    $region22: #{vndgcnn_forward.1} parent=1 // pred_check
      _
    $region23: #{vndgcnn_forward.1} parent=1 // pred_check_branch
      %43 = sbr.rel (0) target = $region25
    $region24: #{vndgcnn_forward.1} parent=1 // pred_region
      %44 = dma.done [#allocation5], 2048
    $region25: #{vndgcnn_forward.1} parent=1 // pred_fallthru
      _
    // Predicated region
    $region26: #{vndgcnn_forward.1} parent=1 // pred_check
      _
    $region27: #{vndgcnn_forward.1} parent=1 // pred_check_branch
      %46 = sbr.rel (0) target = $region29
    $region28: #{vndgcnn_forward.1} parent=1 // pred_region
      %47 = dma.done [#allocation7], 2048
    $region29: #{vndgcnn_forward.1} parent=1 // pred_fallthru
      _
    %v49 = vld [vmem:[%s1] sm:$0xf]
    %v50 = vld [vmem:[#allocation4] sm:$0xff]
    %v51 = vld [vmem:[#allocation4 + $0x8] sm:$0xff]
    %v52 = vld [vmem:[#allocation4 + $0x10] sm:$0xff]
    %v53 = vld [vmem:[#allocation4 + $0x18] sm:$0xff]
    %v54 = vld [vmem:[#allocation4 + $0x20] sm:$0xff]
    %v55 = vld [vmem:[#allocation4 + $0x28] sm:$0xff]
    %v56 = vld [vmem:[#allocation4 + $0x30] sm:$0xff]
    %v57 = vld [vmem:[#allocation4 + $0x38] sm:$0xff]
    %v58 = vld [vmem:[#allocation4 + $0x40] sm:$0xff]
    %v59 = vld [vmem:[#allocation4 + $0x48] sm:$0xff]
    %v60 = vld [vmem:[#allocation4 + $0x50] sm:$0xff]
    %v61 = vld [vmem:[#allocation4 + $0x58] sm:$0xff]
    %v62 = vld [vmem:[#allocation4 + $0x60] sm:$0xff]
    %v63 = vld [vmem:[#allocation4 + $0x68] sm:$0xff]
    %v64 = vld [vmem:[#allocation4 + $0x70] sm:$0xff]
    %v65 = vld [vmem:[#allocation4 + $0x78] sm:$0xff]
    %v66 = vld [vmem:[#allocation6] sm:$0xf]
    %v67 = vld [vmem:[#allocation6 + $0x4] sm:$0xf]
    %v68 = vld [vmem:[#allocation6 + $0x8] sm:$0xf]
    %v69 = vld [vmem:[#allocation6 + $0xc] sm:$0xf]
    %v70 = vld [vmem:[#allocation6 + $0x10] sm:$0xf]
    %v71 = vld [vmem:[#allocation6 + $0x14] sm:$0xf]
    %v72 = vld [vmem:[#allocation6 + $0x18] sm:$0xf]
    %v73 = vld [vmem:[#allocation6 + $0x1c] sm:$0xf]
    %v74 = vld [vmem:[#allocation6 + $0x20] sm:$0xf]
    %v75 = vld [vmem:[#allocation6 + $0x24] sm:$0xf]
    %v76 = vld [vmem:[#allocation6 + $0x28] sm:$0xf]
    %v77 = vld [vmem:[#allocation6 + $0x2c] sm:$0xf]
    %v78 = vld [vmem:[#allocation6 + $0x30] sm:$0xf]
    %v79 = vld [vmem:[#allocation6 + $0x34] sm:$0xf]
    %v80 = vld [vmem:[#allocation6 + $0x38] sm:$0xf]
    %v81 = vld [vmem:[#allocation6 + $0x3c] sm:$0xf]
    %v82 = vld [vmem:[#allocation6 + $0x40] sm:$0xf]
    %v83 = vld [vmem:[#allocation6 + $0x44] sm:$0xf]
    %v84 = vld [vmem:[#allocation6 + $0x48] sm:$0xf]
    %v85 = vld [vmem:[#allocation6 + $0x4c] sm:$0xf]
    %v86 = vld [vmem:[#allocation6 + $0x50] sm:$0xf]
    %v87 = vld [vmem:[#allocation6 + $0x54] sm:$0xf]
    %v88 = vld [vmem:[#allocation6 + $0x58] sm:$0xf]
    %v89 = vld [vmem:[#allocation6 + $0x5c] sm:$0xf]
    %v90 = vld [vmem:[#allocation6 + $0x60] sm:$0xf]
    %v91 = vld [vmem:[#allocation6 + $0x64] sm:$0xf]
    %v92 = vld [vmem:[#allocation6 + $0x68] sm:$0xf]
    %v93 = vld [vmem:[#allocation6 + $0x6c] sm:$0xf]
    %v94 = vld [vmem:[#allocation6 + $0x70] sm:$0xf]
    %v95 = vld [vmem:[#allocation6 + $0x74] sm:$0xf]
    %v96 = vld [vmem:[#allocation6 + $0x78] sm:$0xf]
    %v97 = vld [vmem:[#allocation6 + $0x7c] sm:$0xf]
    %v98 = vld [vmem:[%s4] sm:$0x1]
    %vm99 = vcmask 64512
    %100 = vst.msk [vmem:[#allocation2] sm:$0xff] %vm99, 0.0
    %101 = vst.msk [vmem:[#allocation2 + $0x8] sm:$0xff] %vm99, 0.0
    %102 = vst.msk [vmem:[#allocation2 + $0x10] sm:$0xff] %vm99, 0.0
    %103 = vst.msk [vmem:[#allocation2 + $0x18] sm:$0xff] %vm99, 0.0
    %104 = vst.msk [vmem:[#allocation2 + $0x20] sm:$0xff] %vm99, 0.0
    %105 = vst.msk [vmem:[#allocation2 + $0x28] sm:$0xff] %vm99, 0.0
    %106 = vst.msk [vmem:[#allocation2 + $0x30] sm:$0xff] %vm99, 0.0
    %107 = vst.msk [vmem:[#allocation2 + $0x38] sm:$0xff] %vm99, 0.0
    %108 = vst.msk [vmem:[#allocation2 + $0x40] sm:$0xff] %vm99, 0.0
    %109 = vst.msk [vmem:[#allocation2 + $0x48] sm:$0xff] %vm99, 0.0
    %v110 = vlaneseq
    %v111 = vand.u32 %v110, 127
    %v112 = vcvt.s32.f32 %v111
    %v113 = vld [vmem:[%s0] sm:$0x3f]
    %v114 = vpack.c.bf16 %v113, %v113
    %vm115 = vcmask 48128
    %v117 = vsel %vm115, %v113, 0
    %119 = vmatprep.subr.mxu0 0.0
    %120 = vmatpush1.xpose.msra.mxu0 %v117
    %121 = vmatprep.subr.mxu0 0.0
    %122 = vmatpush1.xpose.msra.mxu0 0.0
    %123 = vmatprep.subr.mxu0 0.0
    %124 = vmatpush1.xpose.msra.mxu0 0.0
    %125 = vmatprep.subr.mxu0 0.0
    %126 = vmatpush1.xpose.msra.mxu0 0.0
    %127 = vmatprep.subr.mxu0 0.0
    %128 = vmatpush1.xpose.msra.mxu0 0.0
    %129 = vmatprep.subr.mxu0 0.0
    %130 = vmatpush1.xpose.msra.mxu0 0.0
    %131 = vmatprep.subr.mxu0 0.0
    %132 = vmatpush1.xpose.msra.mxu0 0.0
    %133 = vmatprep.subr.mxu0 0.0
    %134 = vmatpush1.xpose.msra.mxu0 0.0
    %135 = vmatprep.subr.mxu0 0.0
    %136 = vmatpush1.xpose.msra.mxu0 0.0
    %137 = vmatprep.subr.mxu0 0.0
    %138 = vmatpush1.xpose.msra.mxu0 0.0
    %139 = vmatprep.subr.mxu0 0.0
    %140 = vmatpush1.xpose.msra.mxu0 0.0
    %141 = vmatprep.subr.mxu0 0.0
    %142 = vmatpush1.xpose.msra.mxu0 0.0
    %143 = vmatprep.subr.mxu0 0.0
    %144 = vmatpush1.xpose.msra.mxu0 0.0
    %145 = vmatprep.subr.mxu0 0.0
    %146 = vmatpush1.xpose.msra.mxu0 0.0
    %147 = vmatprep.subr.mxu0 0.0
    %148 = vmatpush1.xpose.msra.mxu0 0.0
    %149 = vmatprep.subr.mxu0 0.0
    %150 = vmatpush1.xpose.msra.mxu0 0.0
    %151 = vmatprep.subr.mxu0 0.0
    %152 = vmatpush1.xpose.msra.mxu0 0.0
    %153 = vmatprep.subr.mxu0 0.0
    %154 = vmatpush1.xpose.msra.mxu0 0.0
    %155 = vmatprep.subr.mxu0 0.0
    %156 = vmatpush1.xpose.msra.mxu0 0.0
    %157 = vmatprep.subr.mxu0 0.0
    %158 = vmatpush1.xpose.msra.mxu0 0.0
    %159 = vmatprep.subr.mxu0 0.0
    %160 = vmatpush1.xpose.msra.mxu0 0.0
    %161 = vmatprep.subr.mxu0 0.0
    %162 = vmatpush1.xpose.msra.mxu0 0.0
    %163 = vmatprep.subr.mxu0 0.0
    %164 = vmatpush1.xpose.msra.mxu0 0.0
    %165 = vmatprep.subr.mxu0 0.0
    %166 = vmatpush1.xpose.msra.mxu0 0.0
    %167 = vmatprep.subr.mxu0 0.0
    %168 = vmatpush1.xpose.msra.mxu0 0.0
    %169 = vmatprep.subr.mxu0 0.0
    %170 = vmatpush1.xpose.msra.mxu0 0.0
    %171 = vmatprep.subr.mxu0 0.0
    %172 = vmatpush1.xpose.msra.mxu0 0.0
    %173 = vmatprep.subr.mxu0 0.0
    %174 = vmatpush1.xpose.msra.mxu0 0.0
    %175 = vmatprep.subr.mxu0 0.0
    %176 = vmatpush1.xpose.msra.mxu0 0.0
    %177 = vmatprep.subr.mxu0 0.0
    %178 = vmatpush1.xpose.msra.mxu0 0.0
    %179 = vmatprep.subr.mxu0 0.0
    %180 = vmatpush1.xpose.msra.mxu0 0.0
    %181 = vmatprep.subr.mxu0 0.0
    %182 = vmatpush1.xpose.msra.mxu0 0.0
    %183 = vmatprep.mubr.f32.mxu0 0.0
    %184 = vmatmul.mubr.f32.gmra.mrb[0].mxu0 %v117
    %v185 = vpop.f32.mrb[0].mxu0
    %v186 = vadd.f32 0.0, %v185
    %v187 = vpop.f32.mrb[0].mxu0
    %188 = vdwg.mxu0
    %v189 = vmul.f32 %v113, %v113
    %vm190 = vcmask 46080
    %v191 = vsel %vm190, %v189, 0.0
    %v192 = vrot.slane %v191, 4
    %v193 = vadd.f32 %v191, %v192
    %v194 = vrot.slane %v193, 2
    %v195 = vadd.f32 %v193, %v194
    %v196 = vrot.slane %v195, 1
    %v197 = vadd.f32 %v195, %v196
    %v198 = vmul.f32 %v186, 2.0
    %v199 = vsub.f32 %v198, %v197
    %200 = vst.msk [vmem:[#allocation2 + $0x20] sm:$0x3f] %vm190, %v113
    %v201 = vsel %vm190, %v199, -inf
    %202 = vmax.xlane.f32.xlu0 %v201
    %v203 = vpop.xlane.xlu0 %202
    %vm204 = vcmp.ge.f32.partialorder %v199, %v203
    %v205 = vsel %vm204, %v112, 6.0
    %v206 = vsel %vm190, %v205, inf
    %207 = vmin.xlane.f32.xlu0 %v206
    %v208 = vpop.xlane.xlu0 %207
    %vm209 = vcmp.eq.f32.partialorder %v112, %v208
    %v210 = vsel %vm209, 1, 0
    %v211 = vcvt.s32.f32 %v210
    %v212 = vpack.c.bf16 %v211, %v211
    %v214 = vsel %vm115, %v114, 0
    %v217 = vsel %vm115, %v212, 0
    %219 = vmatprep.subr.bf16.mxu0 0
    %220 = vmatpush1.bf16.xpose.msra.mxu0 %v217
    %221 = vmatprep.subr.bf16.mxu0 0
    %222 = vmatpush1.bf16.xpose.msra.mxu0 0
    %223 = vmatprep.subr.bf16.mxu0 0
    %224 = vmatpush1.bf16.xpose.msra.mxu0 0
    %225 = vmatprep.subr.bf16.mxu0 0
    %226 = vmatpush1.bf16.xpose.msra.mxu0 0
    %227 = vmatprep.subr.bf16.mxu0 0
    %228 = vmatpush1.bf16.xpose.msra.mxu0 0
    %229 = vmatprep.subr.bf16.mxu0 0
    %230 = vmatpush1.bf16.xpose.msra.mxu0 0
    %231 = vmatprep.subr.bf16.mxu0 0
    %232 = vmatpush1.bf16.xpose.msra.mxu0 0
    %233 = vmatprep.subr.bf16.mxu0 0
    %234 = vmatpush1.bf16.xpose.msra.mxu0 0
    %235 = vmatprep.subr.bf16.mxu0 0
    %236 = vmatpush1.bf16.xpose.msra.mxu0 0
    %237 = vmatprep.subr.bf16.mxu0 0
    %238 = vmatpush1.bf16.xpose.msra.mxu0 0
    %239 = vmatprep.subr.bf16.mxu0 0
    %240 = vmatpush1.bf16.xpose.msra.mxu0 0
    %241 = vmatprep.subr.bf16.mxu0 0
    %242 = vmatpush1.bf16.xpose.msra.mxu0 0
    %243 = vmatprep.subr.bf16.mxu0 0
    %244 = vmatpush1.bf16.xpose.msra.mxu0 0
    %245 = vmatprep.subr.bf16.mxu0 0
    %246 = vmatpush1.bf16.xpose.msra.mxu0 0
    %247 = vmatprep.subr.bf16.mxu0 0
    %248 = vmatpush1.bf16.xpose.msra.mxu0 0
    %249 = vmatprep.subr.bf16.mxu0 0
    %250 = vmatpush1.bf16.xpose.msra.mxu0 0
    %251 = vmatprep.mubr.bf16.mxu0 0
    %252 = vmatmul.mubr.bf16.gmra.mrb[0].mxu0 %v214
    %v253 = vpop.f32.mrb[0].mxu0
    %v254 = vadd.f32 0.0, %v253
    %v255 = vpop.f32.mrb[0].mxu0
    %v256 = vpop.f32.mrb[0].mxu0
    %v257 = vpop.f32.mrb[0].mxu0
    %258 = vdwg.mxu0
    %v259 = vsub.f32 %v254, %v113
    %260 = vst.msk [vmem:[#allocation2] sm:$0x3f] %vm190, %v259
    %v261 = vsel %vm209, -inf, %v199
    %v262 = vsel %vm190, %v261, -inf
    %263 = vmax.xlane.f32.xlu0 %v262
    %v264 = vpop.xlane.xlu0 %263
    %vm265 = vcmp.ge.f32.partialorder %v261, %v264
    %v266 = vsel %vm265, %v112, 6.0
    %v267 = vsel %vm190, %v266, inf
    %268 = vmin.xlane.f32.xlu0 %v267
    %v269 = vpop.xlane.xlu0 %268
    %vm270 = vcmp.eq.f32.partialorder %v112, %v269
    %v271 = vsel %vm270, 1, 0
    %v272 = vcvt.s32.f32 %v271
    %v273 = vpack.c.bf16 %v272, %v272
    %v275 = vsel %vm115, %v273, 0
    %277 = vmatprep.subr.bf16.mxu0 0
    %278 = vmatpush1.bf16.xpose.msra.mxu0 %v275
    %279 = vmatprep.subr.bf16.mxu0 0
    %280 = vmatpush1.bf16.xpose.msra.mxu0 0
    %281 = vmatprep.subr.bf16.mxu0 0
    %282 = vmatpush1.bf16.xpose.msra.mxu0 0
    %283 = vmatprep.subr.bf16.mxu0 0
    %284 = vmatpush1.bf16.xpose.msra.mxu0 0
    %285 = vmatprep.subr.bf16.mxu0 0
    %286 = vmatpush1.bf16.xpose.msra.mxu0 0
    %287 = vmatprep.subr.bf16.mxu0 0
    %288 = vmatpush1.bf16.xpose.msra.mxu0 0
    %289 = vmatprep.subr.bf16.mxu0 0
    %290 = vmatpush1.bf16.xpose.msra.mxu0 0
    %291 = vmatprep.subr.bf16.mxu0 0
    %292 = vmatpush1.bf16.xpose.msra.mxu0 0
    %293 = vmatprep.subr.bf16.mxu0 0
    %294 = vmatpush1.bf16.xpose.msra.mxu0 0
    %295 = vmatprep.subr.bf16.mxu0 0
    %296 = vmatpush1.bf16.xpose.msra.mxu0 0
    %297 = vmatprep.subr.bf16.mxu0 0
    %298 = vmatpush1.bf16.xpose.msra.mxu0 0
    %299 = vmatprep.subr.bf16.mxu0 0
    %300 = vmatpush1.bf16.xpose.msra.mxu0 0
    %301 = vmatprep.subr.bf16.mxu0 0
    %302 = vmatpush1.bf16.xpose.msra.mxu0 0
    %303 = vmatprep.subr.bf16.mxu0 0
    %304 = vmatpush1.bf16.xpose.msra.mxu0 0
    %305 = vmatprep.subr.bf16.mxu0 0
    %306 = vmatpush1.bf16.xpose.msra.mxu0 0
    %307 = vmatprep.subr.bf16.mxu0 0
    %308 = vmatpush1.bf16.xpose.msra.mxu0 0
    %309 = vmatprep.mubr.bf16.mxu0 0
    %310 = vmatmul.mubr.bf16.gmra.mrb[0].mxu0 %v214
    %v311 = vpop.f32.mrb[0].mxu0
    %v312 = vadd.f32 0.0, %v311
    %v313 = vpop.f32.mrb[0].mxu0
    %v314 = vpop.f32.mrb[0].mxu0
    %v315 = vpop.f32.mrb[0].mxu0
    %316 = vdwg.mxu0
    %v317 = vsub.f32 %v312, %v113
    %318 = vst.msk [vmem:[#allocation2 + $0x8] sm:$0x3f] %vm190, %v317
    %v319 = vsel %vm270, -inf, %v261
    %v320 = vsel %vm190, %v319, -inf
    %321 = vmax.xlane.f32.xlu0 %v320
    %v322 = vpop.xlane.xlu0 %321
    %vm323 = vcmp.ge.f32.partialorder %v319, %v322
    %v324 = vsel %vm323, %v112, 6.0
    %v325 = vsel %vm190, %v324, inf
    %326 = vmin.xlane.f32.xlu0 %v325
    %v327 = vpop.xlane.xlu0 %326
    %vm328 = vcmp.eq.f32.partialorder %v112, %v327
    %v329 = vsel %vm328, 1, 0
    %v330 = vcvt.s32.f32 %v329
    %v331 = vpack.c.bf16 %v330, %v330
    %v333 = vsel %vm115, %v331, 0
    %335 = vmatprep.subr.bf16.mxu0 0
    %336 = vmatpush1.bf16.xpose.msra.mxu0 %v333
    %337 = vmatprep.subr.bf16.mxu0 0
    %338 = vmatpush1.bf16.xpose.msra.mxu0 0
    %339 = vmatprep.subr.bf16.mxu0 0
    %340 = vmatpush1.bf16.xpose.msra.mxu0 0
    %341 = vmatprep.subr.bf16.mxu0 0
    %342 = vmatpush1.bf16.xpose.msra.mxu0 0
    %343 = vmatprep.subr.bf16.mxu0 0
    %344 = vmatpush1.bf16.xpose.msra.mxu0 0
    %345 = vmatprep.subr.bf16.mxu0 0
    %346 = vmatpush1.bf16.xpose.msra.mxu0 0
    %347 = vmatprep.subr.bf16.mxu0 0
    %348 = vmatpush1.bf16.xpose.msra.mxu0 0
    %349 = vmatprep.subr.bf16.mxu0 0
    %350 = vmatpush1.bf16.xpose.msra.mxu0 0
    %351 = vmatprep.subr.bf16.mxu0 0
    %352 = vmatpush1.bf16.xpose.msra.mxu0 0
    %353 = vmatprep.subr.bf16.mxu0 0
    %354 = vmatpush1.bf16.xpose.msra.mxu0 0
    %355 = vmatprep.subr.bf16.mxu0 0
    %356 = vmatpush1.bf16.xpose.msra.mxu0 0
    %357 = vmatprep.subr.bf16.mxu0 0
    %358 = vmatpush1.bf16.xpose.msra.mxu0 0
    %359 = vmatprep.subr.bf16.mxu0 0
    %360 = vmatpush1.bf16.xpose.msra.mxu0 0
    %361 = vmatprep.subr.bf16.mxu0 0
    %362 = vmatpush1.bf16.xpose.msra.mxu0 0
    %363 = vmatprep.subr.bf16.mxu0 0
    %364 = vmatpush1.bf16.xpose.msra.mxu0 0
    %365 = vmatprep.subr.bf16.mxu0 0
    %366 = vmatpush1.bf16.xpose.msra.mxu0 0
    %367 = vmatprep.mubr.bf16.mxu0 0
    %368 = vmatmul.mubr.bf16.gmra.mrb[0].mxu0 %v214
    %v369 = vpop.f32.mrb[0].mxu0
    %v370 = vadd.f32 0.0, %v369
    %v371 = vpop.f32.mrb[0].mxu0
    %v372 = vpop.f32.mrb[0].mxu0
    %v373 = vpop.f32.mrb[0].mxu0
    %374 = vdwg.mxu0
    %v375 = vsub.f32 %v370, %v113
    %376 = vst.msk [vmem:[#allocation2 + $0x10] sm:$0x3f] %vm190, %v375
    %v377 = vsel %vm328, -inf, %v319
    %v378 = vsel %vm190, %v377, -inf
    %379 = vmax.xlane.f32.xlu0 %v378
    %v380 = vpop.xlane.xlu0 %379
    %vm381 = vcmp.ge.f32.partialorder %v377, %v380
    %v382 = vsel %vm381, %v112, 6.0
    %v383 = vsel %vm190, %v382, inf
    %384 = vmin.xlane.f32.xlu0 %v383
    %v385 = vpop.xlane.xlu0 %384
    %vm386 = vcmp.eq.f32.partialorder %v112, %v385
    %v387 = vsel %vm386, 1, 0
    %v388 = vcvt.s32.f32 %v387
    %v389 = vpack.c.bf16 %v388, %v388
    %v391 = vsel %vm115, %v389, 0
    %393 = vmatprep.subr.bf16.mxu0 0
    %394 = vmatpush1.bf16.xpose.msra.mxu0 %v391
    %395 = vmatprep.subr.bf16.mxu0 0
    %396 = vmatpush1.bf16.xpose.msra.mxu0 0
    %397 = vmatprep.subr.bf16.mxu0 0
    %398 = vmatpush1.bf16.xpose.msra.mxu0 0
    %399 = vmatprep.subr.bf16.mxu0 0
    %400 = vmatpush1.bf16.xpose.msra.mxu0 0
    %401 = vmatprep.subr.bf16.mxu0 0
    %402 = vmatpush1.bf16.xpose.msra.mxu0 0
    %403 = vmatprep.subr.bf16.mxu0 0
    %404 = vmatpush1.bf16.xpose.msra.mxu0 0
    %405 = vmatprep.subr.bf16.mxu0 0
    %406 = vmatpush1.bf16.xpose.msra.mxu0 0
    %407 = vmatprep.subr.bf16.mxu0 0
    %408 = vmatpush1.bf16.xpose.msra.mxu0 0
    %409 = vmatprep.subr.bf16.mxu0 0
    %410 = vmatpush1.bf16.xpose.msra.mxu0 0
    %411 = vmatprep.subr.bf16.mxu0 0
    %412 = vmatpush1.bf16.xpose.msra.mxu0 0
    %413 = vmatprep.subr.bf16.mxu0 0
    %414 = vmatpush1.bf16.xpose.msra.mxu0 0
    %415 = vmatprep.subr.bf16.mxu0 0
    %416 = vmatpush1.bf16.xpose.msra.mxu0 0
    %417 = vmatprep.subr.bf16.mxu0 0
    %418 = vmatpush1.bf16.xpose.msra.mxu0 0
    %419 = vmatprep.subr.bf16.mxu0 0
    %420 = vmatpush1.bf16.xpose.msra.mxu0 0
    %421 = vmatprep.subr.bf16.mxu0 0
    %422 = vmatpush1.bf16.xpose.msra.mxu0 0
    %423 = vmatprep.subr.bf16.mxu0 0
    %424 = vmatpush1.bf16.xpose.msra.mxu0 0
    %425 = vmatprep.mubr.bf16.mxu0 0
    %426 = vmatmul.mubr.bf16.gmra.mrb[0].mxu0 %v214
    %v427 = vpop.f32.mrb[0].mxu0
    %v428 = vadd.f32 0.0, %v427
    %v429 = vpop.f32.mrb[0].mxu0
    %v430 = vpop.f32.mrb[0].mxu0
    %v431 = vpop.f32.mrb[0].mxu0
    %432 = vdwg.mxu0
    %v433 = vsub.f32 %v428, %v113
    %434 = vst.msk [vmem:[#allocation2 + $0x18] sm:$0x3f] %vm190, %v433
    %s435 = scalar_lea.vmem %s0, 8
    %v436 = vld [vmem:[%s435] sm:$0x3f]
    %v437 = vpack.c.bf16 %v436, %v436
    %v439 = vsel %vm115, %v436, 0
    %441 = vmatprep.subr.mxu0 0.0
    %442 = vmatpush1.xpose.msra.mxu0 %v439
    %443 = vmatprep.subr.mxu0 0.0
    %444 = vmatpush1.xpose.msra.mxu0 0.0
    %445 = vmatprep.subr.mxu0 0.0
    %446 = vmatpush1.xpose.msra.mxu0 0.0
    %447 = vmatprep.subr.mxu0 0.0
    %448 = vmatpush1.xpose.msra.mxu0 0.0
    %449 = vmatprep.subr.mxu0 0.0
    %450 = vmatpush1.xpose.msra.mxu0 0.0
    %451 = vmatprep.subr.mxu0 0.0
    %452 = vmatpush1.xpose.msra.mxu0 0.0
    %453 = vmatprep.subr.mxu0 0.0
    %454 = vmatpush1.xpose.msra.mxu0 0.0
    %455 = vmatprep.subr.mxu0 0.0
    %456 = vmatpush1.xpose.msra.mxu0 0.0
    %457 = vmatprep.subr.mxu0 0.0
    %458 = vmatpush1.xpose.msra.mxu0 0.0
    %459 = vmatprep.subr.mxu0 0.0
    %460 = vmatpush1.xpose.msra.mxu0 0.0
    %461 = vmatprep.subr.mxu0 0.0
    %462 = vmatpush1.xpose.msra.mxu0 0.0
    %463 = vmatprep.subr.mxu0 0.0
    %464 = vmatpush1.xpose.msra.mxu0 0.0
    %465 = vmatprep.subr.mxu0 0.0
    %466 = vmatpush1.xpose.msra.mxu0 0.0
    %467 = vmatprep.subr.mxu0 0.0
    %468 = vmatpush1.xpose.msra.mxu0 0.0
    %469 = vmatprep.subr.mxu0 0.0
    %470 = vmatpush1.xpose.msra.mxu0 0.0
    %471 = vmatprep.subr.mxu0 0.0
    %472 = vmatpush1.xpose.msra.mxu0 0.0
    %473 = vmatprep.subr.mxu0 0.0
    %474 = vmatpush1.xpose.msra.mxu0 0.0
    %475 = vmatprep.subr.mxu0 0.0
    %476 = vmatpush1.xpose.msra.mxu0 0.0
    %477 = vmatprep.subr.mxu0 0.0
    %478 = vmatpush1.xpose.msra.mxu0 0.0
    %479 = vmatprep.subr.mxu0 0.0
    %480 = vmatpush1.xpose.msra.mxu0 0.0
    %481 = vmatprep.subr.mxu0 0.0
    %482 = vmatpush1.xpose.msra.mxu0 0.0
    %483 = vmatprep.subr.mxu0 0.0
    %484 = vmatpush1.xpose.msra.mxu0 0.0
    %485 = vmatprep.subr.mxu0 0.0
    %486 = vmatpush1.xpose.msra.mxu0 0.0
    %487 = vmatprep.subr.mxu0 0.0
    %488 = vmatpush1.xpose.msra.mxu0 0.0
    %489 = vmatprep.subr.mxu0 0.0
    %490 = vmatpush1.xpose.msra.mxu0 0.0
    %491 = vmatprep.subr.mxu0 0.0
    %492 = vmatpush1.xpose.msra.mxu0 0.0
    %493 = vmatprep.subr.mxu0 0.0
    %494 = vmatpush1.xpose.msra.mxu0 0.0
    %495 = vmatprep.subr.mxu0 0.0
    %496 = vmatpush1.xpose.msra.mxu0 0.0
    %497 = vmatprep.subr.mxu0 0.0
    %498 = vmatpush1.xpose.msra.mxu0 0.0
    %499 = vmatprep.subr.mxu0 0.0
    %500 = vmatpush1.xpose.msra.mxu0 0.0
    %501 = vmatprep.subr.mxu0 0.0
    %502 = vmatpush1.xpose.msra.mxu0 0.0
    %503 = vmatprep.subr.mxu0 0.0
    %504 = vmatpush1.xpose.msra.mxu0 0.0
    %505 = vmatprep.mubr.f32.mxu0 0.0
    %506 = vmatmul.mubr.f32.gmra.mrb[0].mxu0 %v439
    %v507 = vpop.f32.mrb[0].mxu0
    %v508 = vadd.f32 0.0, %v507
    %v509 = vpop.f32.mrb[0].mxu0
    %510 = vdwg.mxu0
    %v511 = vmul.f32 %v436, %v436
    %v512 = vsel %vm190, %v511, 0.0
    %v513 = vrot.slane %v512, 4
    %v514 = vadd.f32 %v512, %v513
    %v515 = vrot.slane %v514, 2
    %v516 = vadd.f32 %v514, %v515
    %v517 = vrot.slane %v516, 1
    %v518 = vadd.f32 %v516, %v517
    %v519 = vmul.f32 %v508, 2.0
    %v520 = vsub.f32 %v519, %v518
    %521 = vst.msk [vmem:[#allocation2 + $0x48] sm:$0x3f] %vm190, %v436
    %v522 = vsel %vm190, %v520, -inf
    %523 = vmax.xlane.f32.xlu0 %v522
    %v524 = vpop.xlane.xlu0 %523
    %vm525 = vcmp.ge.f32.partialorder %v520, %v524
    %v526 = vsel %vm525, %v112, 6.0
    %v527 = vsel %vm190, %v526, inf
    %528 = vmin.xlane.f32.xlu0 %v527
    %v529 = vpop.xlane.xlu0 %528
    %vm530 = vcmp.eq.f32.partialorder %v112, %v529
    %v531 = vsel %vm530, 1, 0
    %v532 = vcvt.s32.f32 %v531
    %v533 = vpack.c.bf16 %v532, %v532
    %v535 = vsel %vm115, %v437, 0
    %v538 = vsel %vm115, %v533, 0
    %540 = vmatprep.subr.bf16.mxu0 0
    %541 = vmatpush1.bf16.xpose.msra.mxu0 %v538
    %542 = vmatprep.subr.bf16.mxu0 0
    %543 = vmatpush1.bf16.xpose.msra.mxu0 0
    %544 = vmatprep.subr.bf16.mxu0 0
    %545 = vmatpush1.bf16.xpose.msra.mxu0 0
    %546 = vmatprep.subr.bf16.mxu0 0
    %547 = vmatpush1.bf16.xpose.msra.mxu0 0
    %548 = vmatprep.subr.bf16.mxu0 0
    %549 = vmatpush1.bf16.xpose.msra.mxu0 0
    %550 = vmatprep.subr.bf16.mxu0 0
    %551 = vmatpush1.bf16.xpose.msra.mxu0 0
    %552 = vmatprep.subr.bf16.mxu0 0
    %553 = vmatpush1.bf16.xpose.msra.mxu0 0
    %554 = vmatprep.subr.bf16.mxu0 0
    %555 = vmatpush1.bf16.xpose.msra.mxu0 0
    %556 = vmatprep.subr.bf16.mxu0 0
    %557 = vmatpush1.bf16.xpose.msra.mxu0 0
    %558 = vmatprep.subr.bf16.mxu0 0
    %559 = vmatpush1.bf16.xpose.msra.mxu0 0
    %560 = vmatprep.subr.bf16.mxu0 0
    %561 = vmatpush1.bf16.xpose.msra.mxu0 0
    %562 = vmatprep.subr.bf16.mxu0 0
    %563 = vmatpush1.bf16.xpose.msra.mxu0 0
    %564 = vmatprep.subr.bf16.mxu0 0
    %565 = vmatpush1.bf16.xpose.msra.mxu0 0
    %566 = vmatprep.subr.bf16.mxu0 0
    %567 = vmatpush1.bf16.xpose.msra.mxu0 0
    %568 = vmatprep.subr.bf16.mxu0 0
    %569 = vmatpush1.bf16.xpose.msra.mxu0 0
    %570 = vmatprep.subr.bf16.mxu0 0
    %571 = vmatpush1.bf16.xpose.msra.mxu0 0
    %572 = vmatprep.mubr.bf16.mxu0 0
    %573 = vmatmul.mubr.bf16.gmra.mrb[0].mxu0 %v535
    %v574 = vpop.f32.mrb[0].mxu0
    %v575 = vadd.f32 0.0, %v574
    %v576 = vpop.f32.mrb[0].mxu0
    %v577 = vpop.f32.mrb[0].mxu0
    %v578 = vpop.f32.mrb[0].mxu0
    %579 = vdwg.mxu0
    %v580 = vsub.f32 %v575, %v436
    %581 = vst.msk [vmem:[#allocation2 + $0x28] sm:$0x3f] %vm190, %v580
    %v582 = vsel %vm530, -inf, %v520
    %v583 = vsel %vm190, %v582, -inf
    %584 = vmax.xlane.f32.xlu0 %v583
    %v585 = vpop.xlane.xlu0 %584
    %vm586 = vcmp.ge.f32.partialorder %v582, %v585
    %v587 = vsel %vm586, %v112, 6.0
    %v588 = vsel %vm190, %v587, inf
    %589 = vmin.xlane.f32.xlu0 %v588
    %v590 = vpop.xlane.xlu0 %589
    %vm591 = vcmp.eq.f32.partialorder %v112, %v590
    %v592 = vsel %vm591, 1, 0
    %v593 = vcvt.s32.f32 %v592
    %v594 = vpack.c.bf16 %v593, %v593
    %v596 = vsel %vm115, %v594, 0
    %598 = vmatprep.subr.bf16.mxu0 0
    %599 = vmatpush1.bf16.xpose.msra.mxu0 %v596
    %600 = vmatprep.subr.bf16.mxu0 0
    %601 = vmatpush1.bf16.xpose.msra.mxu0 0
    %602 = vmatprep.subr.bf16.mxu0 0
    %603 = vmatpush1.bf16.xpose.msra.mxu0 0
    %604 = vmatprep.subr.bf16.mxu0 0
    %605 = vmatpush1.bf16.xpose.msra.mxu0 0
    %606 = vmatprep.subr.bf16.mxu0 0
    %607 = vmatpush1.bf16.xpose.msra.mxu0 0
    %608 = vmatprep.subr.bf16.mxu0 0
    %609 = vmatpush1.bf16.xpose.msra.mxu0 0
    %610 = vmatprep.subr.bf16.mxu0 0
    %611 = vmatpush1.bf16.xpose.msra.mxu0 0
    %612 = vmatprep.subr.bf16.mxu0 0
    %613 = vmatpush1.bf16.xpose.msra.mxu0 0
    %614 = vmatprep.subr.bf16.mxu0 0
    %615 = vmatpush1.bf16.xpose.msra.mxu0 0
    %616 = vmatprep.subr.bf16.mxu0 0
    %617 = vmatpush1.bf16.xpose.msra.mxu0 0
    %618 = vmatprep.subr.bf16.mxu0 0
    %619 = vmatpush1.bf16.xpose.msra.mxu0 0
    %620 = vmatprep.subr.bf16.mxu0 0
    %621 = vmatpush1.bf16.xpose.msra.mxu0 0
    %622 = vmatprep.subr.bf16.mxu0 0
    %623 = vmatpush1.bf16.xpose.msra.mxu0 0
    %624 = vmatprep.subr.bf16.mxu0 0
    %625 = vmatpush1.bf16.xpose.msra.mxu0 0
    %626 = vmatprep.subr.bf16.mxu0 0
    %627 = vmatpush1.bf16.xpose.msra.mxu0 0
    %628 = vmatprep.subr.bf16.mxu0 0
    %629 = vmatpush1.bf16.xpose.msra.mxu0 0
    %630 = vmatprep.mubr.bf16.mxu0 0
    %631 = vmatmul.mubr.bf16.gmra.mrb[0].mxu0 %v535
    %v632 = vpop.f32.mrb[0].mxu0
    %v633 = vadd.f32 0.0, %v632
    %v634 = vpop.f32.mrb[0].mxu0
    %v635 = vpop.f32.mrb[0].mxu0
    %v636 = vpop.f32.mrb[0].mxu0
    %637 = vdwg.mxu0
    %v638 = vsub.f32 %v633, %v436
    %639 = vst.msk [vmem:[#allocation2 + $0x30] sm:$0x3f] %vm190, %v638
    %v640 = vsel %vm591, -inf, %v582
    %v641 = vsel %vm190, %v640, -inf
    %642 = vmax.xlane.f32.xlu0 %v641
    %v643 = vpop.xlane.xlu0 %642
    %vm644 = vcmp.ge.f32.partialorder %v640, %v643
    %v645 = vsel %vm644, %v112, 6.0
    %v646 = vsel %vm190, %v645, inf
    %647 = vmin.xlane.f32.xlu0 %v646
    %v648 = vpop.xlane.xlu0 %647
    %vm649 = vcmp.eq.f32.partialorder %v112, %v648
    %v650 = vsel %vm649, 1, 0
    %v651 = vcvt.s32.f32 %v650
    %v652 = vpack.c.bf16 %v651, %v651
    %v654 = vsel %vm115, %v652, 0
    %656 = vmatprep.subr.bf16.mxu0 0
    %657 = vmatpush1.bf16.xpose.msra.mxu0 %v654
    %658 = vmatprep.subr.bf16.mxu0 0
    %659 = vmatpush1.bf16.xpose.msra.mxu0 0
    %660 = vmatprep.subr.bf16.mxu0 0
    %661 = vmatpush1.bf16.xpose.msra.mxu0 0
    %662 = vmatprep.subr.bf16.mxu0 0
    %663 = vmatpush1.bf16.xpose.msra.mxu0 0
    %664 = vmatprep.subr.bf16.mxu0 0
    %665 = vmatpush1.bf16.xpose.msra.mxu0 0
    %666 = vmatprep.subr.bf16.mxu0 0
    %667 = vmatpush1.bf16.xpose.msra.mxu0 0
    %668 = vmatprep.subr.bf16.mxu0 0
    %669 = vmatpush1.bf16.xpose.msra.mxu0 0
    %670 = vmatprep.subr.bf16.mxu0 0
    %671 = vmatpush1.bf16.xpose.msra.mxu0 0
    %672 = vmatprep.subr.bf16.mxu0 0
    %673 = vmatpush1.bf16.xpose.msra.mxu0 0
    %674 = vmatprep.subr.bf16.mxu0 0
    %675 = vmatpush1.bf16.xpose.msra.mxu0 0
    %676 = vmatprep.subr.bf16.mxu0 0
    %677 = vmatpush1.bf16.xpose.msra.mxu0 0
    %678 = vmatprep.subr.bf16.mxu0 0
    %679 = vmatpush1.bf16.xpose.msra.mxu0 0
    %680 = vmatprep.subr.bf16.mxu0 0
    %681 = vmatpush1.bf16.xpose.msra.mxu0 0
    %682 = vmatprep.subr.bf16.mxu0 0
    %683 = vmatpush1.bf16.xpose.msra.mxu0 0
    %684 = vmatprep.subr.bf16.mxu0 0
    %685 = vmatpush1.bf16.xpose.msra.mxu0 0
    %686 = vmatprep.subr.bf16.mxu0 0
    %687 = vmatpush1.bf16.xpose.msra.mxu0 0
    %688 = vmatprep.mubr.bf16.mxu0 0
    %689 = vmatmul.mubr.bf16.gmra.mrb[0].mxu0 %v535
    %v690 = vpop.f32.mrb[0].mxu0
    %v691 = vadd.f32 0.0, %v690
    %v692 = vpop.f32.mrb[0].mxu0
    %v693 = vpop.f32.mrb[0].mxu0
    %v694 = vpop.f32.mrb[0].mxu0
    %695 = vdwg.mxu0
    %v696 = vsub.f32 %v691, %v436
    %697 = vst.msk [vmem:[#allocation2 + $0x38] sm:$0x3f] %vm190, %v696
    %v698 = vsel %vm649, -inf, %v640
    %v699 = vsel %vm190, %v698, -inf
    %700 = vmax.xlane.f32.xlu0 %v699
    %v701 = vpop.xlane.xlu0 %700
    %vm702 = vcmp.ge.f32.partialorder %v698, %v701
    %v703 = vsel %vm702, %v112, 6.0
    %v704 = vsel %vm190, %v703, inf
    %705 = vmin.xlane.f32.xlu0 %v704
    %v706 = vpop.xlane.xlu0 %705
    %vm707 = vcmp.eq.f32.partialorder %v112, %v706
    %v708 = vsel %vm707, 1, 0
    %v709 = vcvt.s32.f32 %v708
    %v710 = vpack.c.bf16 %v709, %v709
    %v712 = vsel %vm115, %v710, 0
    %714 = vmatprep.subr.bf16.mxu0 0
    %715 = vmatpush1.bf16.xpose.msra.mxu0 %v712
    %716 = vmatprep.subr.bf16.mxu0 0
    %717 = vmatpush1.bf16.xpose.msra.mxu0 0
    %718 = vmatprep.subr.bf16.mxu0 0
    %719 = vmatpush1.bf16.xpose.msra.mxu0 0
    %720 = vmatprep.subr.bf16.mxu0 0
    %721 = vmatpush1.bf16.xpose.msra.mxu0 0
    %722 = vmatprep.subr.bf16.mxu0 0
    %723 = vmatpush1.bf16.xpose.msra.mxu0 0
    %724 = vmatprep.subr.bf16.mxu0 0
    %725 = vmatpush1.bf16.xpose.msra.mxu0 0
    %726 = vmatprep.subr.bf16.mxu0 0
    %727 = vmatpush1.bf16.xpose.msra.mxu0 0
    %728 = vmatprep.subr.bf16.mxu0 0
    %729 = vmatpush1.bf16.xpose.msra.mxu0 0
    %730 = vmatprep.subr.bf16.mxu0 0
    %731 = vmatpush1.bf16.xpose.msra.mxu0 0
    %732 = vmatprep.subr.bf16.mxu0 0
    %733 = vmatpush1.bf16.xpose.msra.mxu0 0
    %734 = vmatprep.subr.bf16.mxu0 0
    %735 = vmatpush1.bf16.xpose.msra.mxu0 0
    %736 = vmatprep.subr.bf16.mxu0 0
    %737 = vmatpush1.bf16.xpose.msra.mxu0 0
    %738 = vmatprep.subr.bf16.mxu0 0
    %739 = vmatpush1.bf16.xpose.msra.mxu0 0
    %740 = vmatprep.subr.bf16.mxu0 0
    %741 = vmatpush1.bf16.xpose.msra.mxu0 0
    %742 = vmatprep.subr.bf16.mxu0 0
    %743 = vmatpush1.bf16.xpose.msra.mxu0 0
    %744 = vmatprep.subr.bf16.mxu0 0
    %745 = vmatpush1.bf16.xpose.msra.mxu0 0
    %746 = vmatprep.mubr.bf16.mxu0 0
    %747 = vmatmul.mubr.bf16.gmra.mrb[0].mxu0 %v535
    %v748 = vpop.f32.mrb[0].mxu0
    %v749 = vadd.f32 0.0, %v748
    %v750 = vpop.f32.mrb[0].mxu0
    %v751 = vpop.f32.mrb[0].mxu0
    %v752 = vpop.f32.mrb[0].mxu0
    %753 = vdwg.mxu0
    %v754 = vsub.f32 %v749, %v436
    %755 = vst.msk [vmem:[#allocation2 + $0x40] sm:$0x3f] %vm190, %v754
    %v756 = vld [vmem:[#allocation2] sm:$0xff]
    %v757 = vld [vmem:[#allocation2 + $0x8] sm:$0xff]
    %v758 = vld [vmem:[#allocation2 + $0x10] sm:$0xff]
    %v759 = vld [vmem:[#allocation2 + $0x18] sm:$0xff]
    %v760 = vld [vmem:[#allocation2 + $0x20] sm:$0xff]
    %v761 = vld [vmem:[#allocation2 + $0x28] sm:$0xff]
    %v762 = vld [vmem:[#allocation2 + $0x30] sm:$0xff]
    %v763 = vld [vmem:[#allocation2 + $0x38] sm:$0xff]
    %v764 = vld [vmem:[#allocation2 + $0x40] sm:$0xff]
    %v765 = vld [vmem:[#allocation2 + $0x48] sm:$0xff]
    %v766 = vpack.c.bf16 %v757, %v756
    %v767 = vpack.c.bf16 %v759, %v758
    %v768 = vpack.c.bf16 %v761, %v760
    %v769 = vpack.c.bf16 %v763, %v762
    %v770 = vpack.c.bf16 %v765, %v764
    %v772 = vsel %vm99, %v766, 0
    %v775 = vsel %vm99, %v767, 0
    %v778 = vsel %vm99, %v768, 0
    %v781 = vsel %vm99, %v769, 0
    %v784 = vsel %vm99, %v770, 0
    %vm786 = vcmask 1043456
    %v788 = vsel %vm786, %v49, 0
    %790 = vmatprep.subr.bf16.mxu0 0
    %791 = vmatpush1.bf16.msra.mxu0 %v788
    %792 = vmatprep.subr.bf16.mxu0 0
    %793 = vmatpush1.bf16.msra.mxu0 0
    %794 = vmatprep.subr.bf16.mxu0 0
    %795 = vmatpush1.bf16.msra.mxu0 0
    %796 = vmatprep.subr.bf16.mxu0 0
    %797 = vmatpush1.bf16.msra.mxu0 0
    %798 = vmatprep.subr.bf16.mxu0 0
    %799 = vmatpush1.bf16.msra.mxu0 0
    %800 = vmatprep.subr.bf16.mxu0 0
    %801 = vmatpush1.bf16.msra.mxu0 0
    %802 = vmatprep.subr.bf16.mxu0 0
    %803 = vmatpush1.bf16.msra.mxu0 0
    %804 = vmatprep.subr.bf16.mxu0 0
    %805 = vmatpush1.bf16.msra.mxu0 0
    %806 = vmatprep.subr.bf16.mxu0 0
    %807 = vmatpush1.bf16.msra.mxu0 0
    %808 = vmatprep.subr.bf16.mxu0 0
    %809 = vmatpush1.bf16.msra.mxu0 0
    %810 = vmatprep.subr.bf16.mxu0 0
    %811 = vmatpush1.bf16.msra.mxu0 0
    %812 = vmatprep.subr.bf16.mxu0 0
    %813 = vmatpush1.bf16.msra.mxu0 0
    %814 = vmatprep.subr.bf16.mxu0 0
    %815 = vmatpush1.bf16.msra.mxu0 0
    %816 = vmatprep.subr.bf16.mxu0 0
    %817 = vmatpush1.bf16.msra.mxu0 0
    %818 = vmatprep.subr.bf16.mxu0 0
    %819 = vmatpush1.bf16.msra.mxu0 0
    %820 = vmatprep.subr.bf16.mxu0 0
    %821 = vmatpush1.bf16.msra.mxu0 0
    %822 = vmatprep.mubr.bf16.mxu0 0
    %823 = vmatmul.mubr.bf16.gmra.mrb[0].mxu0 %v772
    %v824 = vpop.f32.mrb[0].mxu0
    %v825 = vadd.f32 0.0, %v824
    %v826 = vpop.f32.mrb[0].mxu0
    %v827 = vpop.f32.mrb[0].mxu0
    %v828 = vadd.f32 0.0, %v827
    %v829 = vpop.f32.mrb[0].mxu0
    %830 = vmatprep.mubr.bf16.mxu0 0
    %831 = vmatmul.mubr.bf16.gmra.mrb[0].mxu0 %v775
    %v832 = vpop.f32.mrb[0].mxu0
    %v833 = vadd.f32 0.0, %v832
    %v834 = vpop.f32.mrb[0].mxu0
    %v835 = vpop.f32.mrb[0].mxu0
    %v836 = vadd.f32 0.0, %v835
    %v837 = vpop.f32.mrb[0].mxu0
    %838 = vmatprep.mubr.bf16.mxu0 0
    %839 = vmatmul.mubr.bf16.gmra.mrb[0].mxu0 %v778
    %v840 = vpop.f32.mrb[0].mxu0
    %v841 = vadd.f32 0.0, %v840
    %v842 = vpop.f32.mrb[0].mxu0
    %v843 = vpop.f32.mrb[0].mxu0
    %v844 = vadd.f32 0.0, %v843
    %v845 = vpop.f32.mrb[0].mxu0
    %846 = vmatprep.mubr.bf16.mxu0 0
    %847 = vmatmul.mubr.bf16.gmra.mrb[0].mxu0 %v781
    %v848 = vpop.f32.mrb[0].mxu0
    %v849 = vadd.f32 0.0, %v848
    %v850 = vpop.f32.mrb[0].mxu0
    %v851 = vpop.f32.mrb[0].mxu0
    %v852 = vadd.f32 0.0, %v851
    %v853 = vpop.f32.mrb[0].mxu0
    %854 = vmatprep.mubr.bf16.mxu0 0
    %855 = vmatmul.mubr.bf16.gmra.mrb[0].mxu0 %v784
    %v856 = vpop.f32.mrb[0].mxu0
    %v857 = vadd.f32 0.0, %v856
    %v858 = vpop.f32.mrb[0].mxu0
    %v859 = vpop.f32.mrb[0].mxu0
    %v860 = vadd.f32 0.0, %v859
    %v861 = vpop.f32.mrb[0].mxu0
    %862 = vdwg.mxu0
    %v863 = vmax.f32 %v825, 0.0
    %v864 = vmax.f32 %v828, 0.0
    %v865 = vmax.f32 %v833, 0.0
    %v866 = vmax.f32 %v836, 0.0
    %v867 = vmax.f32 %v841, 0.0
    %v868 = vmax.f32 %v844, 0.0
    %v869 = vmax.f32 %v849, 0.0
    %v870 = vmax.f32 %v852, 0.0
    %v871 = vmax.f32 %v857, 0.0
    %v872 = vmax.f32 %v860, 0.0
    %v873 = vpack.c.bf16 %v864, %v863
    %v874 = vpack.c.bf16 %v866, %v865
    %v875 = vpack.c.bf16 %v868, %v867
    %v876 = vpack.c.bf16 %v870, %v869
    %v877 = vpack.c.bf16 %v872, %v871
    %v894 = vunpack.c.l.b16 %v50
    %v895 = vunpack.c.h.b16 %v50
    %v896 = vunpack.c.l.b16 %v51
    %v897 = vunpack.c.h.b16 %v51
    %v898 = vunpack.c.l.b16 %v52
    %v899 = vunpack.c.h.b16 %v52
    %v900 = vunpack.c.l.b16 %v53
    %v901 = vunpack.c.h.b16 %v53
    %v902 = vunpack.c.l.b16 %v54
    %v903 = vunpack.c.h.b16 %v54
    %v904 = vunpack.c.l.b16 %v55
    %v905 = vunpack.c.h.b16 %v55
    %v906 = vunpack.c.l.b16 %v56
    %v907 = vunpack.c.h.b16 %v56
    %v908 = vunpack.c.l.b16 %v57
    %v909 = vunpack.c.h.b16 %v57
    %v910 = vunpack.c.l.b16 %v58
    %v911 = vunpack.c.h.b16 %v58
    %v912 = vunpack.c.l.b16 %v59
    %v913 = vunpack.c.h.b16 %v59
    %v914 = vunpack.c.l.b16 %v60
    %v915 = vunpack.c.h.b16 %v60
    %v916 = vunpack.c.l.b16 %v61
    %v917 = vunpack.c.h.b16 %v61
    %v918 = vunpack.c.l.b16 %v62
    %v919 = vunpack.c.h.b16 %v62
    %v920 = vunpack.c.l.b16 %v63
    %v921 = vunpack.c.h.b16 %v63
    %v922 = vunpack.c.l.b16 %v64
    %v923 = vunpack.c.h.b16 %v64
    %v924 = vunpack.c.l.b16 %v65
    %v925 = vunpack.c.h.b16 %v65
    %v926 = vpack.c.b16 %v896, %v894
    %v927 = vpack.c.b16 %v897, %v895
    %v928 = vpack.c.b16 %v900, %v898
    %v929 = vpack.c.b16 %v901, %v899
    %v930 = vpack.c.b16 %v904, %v902
    %v931 = vpack.c.b16 %v905, %v903
    %v932 = vpack.c.b16 %v908, %v906
    %v933 = vpack.c.b16 %v909, %v907
    %v934 = vpack.c.b16 %v912, %v910
    %v935 = vpack.c.b16 %v913, %v911
    %v936 = vpack.c.b16 %v916, %v914
    %v937 = vpack.c.b16 %v917, %v915
    %v938 = vpack.c.b16 %v920, %v918
    %v939 = vpack.c.b16 %v921, %v919
    %v940 = vpack.c.b16 %v924, %v922
    %v941 = vpack.c.b16 %v925, %v923
    %958 = vmatprep.subr.bf16.mxu0 %v927
    %959 = vmatpush1.bf16.msra.mxu0 %v926
    %960 = vmatprep.subr.bf16.mxu0 %v929
    %961 = vmatpush1.bf16.msra.mxu0 %v928
    %962 = vmatprep.subr.bf16.mxu0 %v931
    %963 = vmatpush1.bf16.msra.mxu0 %v930
    %964 = vmatprep.subr.bf16.mxu0 %v933
    %965 = vmatpush1.bf16.msra.mxu0 %v932
    %966 = vmatprep.subr.bf16.mxu0 %v935
    %967 = vmatpush1.bf16.msra.mxu0 %v934
    %968 = vmatprep.subr.bf16.mxu0 %v937
    %969 = vmatpush1.bf16.msra.mxu0 %v936
    %970 = vmatprep.subr.bf16.mxu0 %v939
    %971 = vmatpush1.bf16.msra.mxu0 %v938
    %972 = vmatprep.subr.bf16.mxu0 %v941
    %973 = vmatpush1.bf16.msra.mxu0 %v940
    %974 = vmatprep.subr.bf16.mxu0 0
    %975 = vmatpush1.bf16.msra.mxu0 0
    %976 = vmatprep.subr.bf16.mxu0 0
    %977 = vmatpush1.bf16.msra.mxu0 0
    %978 = vmatprep.subr.bf16.mxu0 0
    %979 = vmatpush1.bf16.msra.mxu0 0
    %980 = vmatprep.subr.bf16.mxu0 0
    %981 = vmatpush1.bf16.msra.mxu0 0
    %982 = vmatprep.subr.bf16.mxu0 0
    %983 = vmatpush1.bf16.msra.mxu0 0
    %984 = vmatprep.subr.bf16.mxu0 0
    %985 = vmatpush1.bf16.msra.mxu0 0
    %986 = vmatprep.subr.bf16.mxu0 0
    %987 = vmatpush1.bf16.msra.mxu0 0
    %988 = vmatprep.subr.bf16.mxu0 0
    %989 = vmatpush1.bf16.msra.mxu0 0
    %990 = vmatprep.mubr.bf16.mxu0 0
    %991 = vmatmul.mubr.bf16.gmra.mrb[0].mxu0 %v873
    %v992 = vpop.f32.mrb[0].mxu0
    %v993 = vadd.f32 0.0, %v992
    %v994 = vpop.f32.mrb[0].mxu0
    %v995 = vadd.f32 0.0, %v994
    %v996 = vpop.f32.mrb[0].mxu0
    %v997 = vadd.f32 0.0, %v996
    %v998 = vpop.f32.mrb[0].mxu0
    %v999 = vadd.f32 0.0, %v998
    %1000 = vmatprep.mubr.bf16.mxu0 0
    %1001 = vmatmul.mubr.bf16.gmra.mrb[0].mxu0 %v874
    %v1002 = vpop.f32.mrb[0].mxu0
    %v1003 = vadd.f32 0.0, %v1002
    %v1004 = vpop.f32.mrb[0].mxu0
    %v1005 = vadd.f32 0.0, %v1004
    %v1006 = vpop.f32.mrb[0].mxu0
    %v1007 = vadd.f32 0.0, %v1006
    %v1008 = vpop.f32.mrb[0].mxu0
    %v1009 = vadd.f32 0.0, %v1008
    %1010 = vmatprep.mubr.bf16.mxu0 0
    %1011 = vmatmul.mubr.bf16.gmra.mrb[0].mxu0 %v875
    %v1012 = vpop.f32.mrb[0].mxu0
    %v1013 = vadd.f32 0.0, %v1012
    %v1014 = vpop.f32.mrb[0].mxu0
    %v1015 = vadd.f32 0.0, %v1014
    %v1016 = vpop.f32.mrb[0].mxu0
    %v1017 = vadd.f32 0.0, %v1016
    %v1018 = vpop.f32.mrb[0].mxu0
    %v1019 = vadd.f32 0.0, %v1018
    %1020 = vmatprep.mubr.bf16.mxu0 0
    %1021 = vmatmul.mubr.bf16.gmra.mrb[0].mxu0 %v876
    %v1022 = vpop.f32.mrb[0].mxu0
    %v1023 = vadd.f32 0.0, %v1022
    %v1024 = vpop.f32.mrb[0].mxu0
    %v1025 = vadd.f32 0.0, %v1024
    %v1026 = vpop.f32.mrb[0].mxu0
    %v1027 = vadd.f32 0.0, %v1026
    %v1028 = vpop.f32.mrb[0].mxu0
    %v1029 = vadd.f32 0.0, %v1028
    %1030 = vmatprep.mubr.bf16.mxu0 0
    %1031 = vmatmul.mubr.bf16.gmra.mrb[0].mxu0 %v877
    %v1032 = vpop.f32.mrb[0].mxu0
    %v1033 = vadd.f32 0.0, %v1032
    %v1034 = vpop.f32.mrb[0].mxu0
    %v1035 = vadd.f32 0.0, %v1034
    %v1036 = vpop.f32.mrb[0].mxu0
    %v1037 = vadd.f32 0.0, %v1036
    %v1038 = vpop.f32.mrb[0].mxu0
    %v1039 = vadd.f32 0.0, %v1038
    %1040 = vdwg.mxu0
    %v1041 = vmax.f32 %v993, 0.0
    %v1042 = vmax.f32 %v995, 0.0
    %v1043 = vmax.f32 %v997, 0.0
    %v1044 = vmax.f32 %v999, 0.0
    %v1045 = vmax.f32 %v1003, 0.0
    %v1046 = vmax.f32 %v1005, 0.0
    %v1047 = vmax.f32 %v1007, 0.0
    %v1048 = vmax.f32 %v1009, 0.0
    %v1049 = vmax.f32 %v1013, 0.0
    %v1050 = vmax.f32 %v1015, 0.0
    %v1051 = vmax.f32 %v1017, 0.0
    %v1052 = vmax.f32 %v1019, 0.0
    %v1053 = vmax.f32 %v1023, 0.0
    %v1054 = vmax.f32 %v1025, 0.0
    %v1055 = vmax.f32 %v1027, 0.0
    %v1056 = vmax.f32 %v1029, 0.0
    %v1057 = vmax.f32 %v1033, 0.0
    %v1058 = vmax.f32 %v1035, 0.0
    %v1059 = vmax.f32 %v1037, 0.0
    %v1060 = vmax.f32 %v1039, 0.0
    %v1061 = vmax.f32 %v1041, %v1043
    %v1062 = vmax.f32 %v1042, %v1044
    %v1063 = vmax.f32 %v1061, %v1045
    %v1064 = vmax.f32 %v1062, %v1046
    %v1065 = vmax.f32 %v1063, %v1047
    %v1066 = vmax.f32 %v1064, %v1048
    %1067 = vst [vmem:[#allocation3] sm:$0xff] %v1065
    %1068 = vst [vmem:[#allocation3 + $0x8] sm:$0xff] %v1066
    %1069 = vst [vmem:[#allocation3 + $0x10] sm:$0xff] %v1049
    %1070 = vst [vmem:[#allocation3 + $0x18] sm:$0xff] %v1050
    %v1071 = vmax.f32 %v1051, %v1053
    %v1072 = vmax.f32 %v1052, %v1054
    %v1073 = vmax.f32 %v1071, %v1055
    %v1074 = vmax.f32 %v1072, %v1056
    %v1075 = vmax.f32 %v1073, %v1057
    %v1076 = vmax.f32 %v1074, %v1058
    %1077 = vst [vmem:[#allocation3 + $0x20] sm:$0xff] %v1075
    %1078 = vst [vmem:[#allocation3 + $0x28] sm:$0xff] %v1076
    %1079 = vst [vmem:[#allocation3 + $0x30] sm:$0xff] %v1059
    %1080 = vst [vmem:[#allocation3 + $0x38] sm:$0xff] %v1060
    %v1081 = vld [vmem:[#allocation3] sm:$0xff]
    %v1082 = vld [vmem:[#allocation3 + $0x8] sm:$0xff]
    %v1083 = vld [vmem:[#allocation3 + $0x10] sm:$0xff]
    %v1084 = vld [vmem:[#allocation3 + $0x18] sm:$0xff]
    %v1085 = vld [vmem:[#allocation3 + $0x20] sm:$0xff]
    %v1086 = vld [vmem:[#allocation3 + $0x28] sm:$0xff]
    %v1087 = vld [vmem:[#allocation3 + $0x30] sm:$0xff]
    %v1088 = vld [vmem:[#allocation3 + $0x38] sm:$0xff]
    %v1089 = vpack.c.bf16 %v1083, %v1081
    %v1090 = vpack.c.bf16 %v1084, %v1082
    %v1091 = vpack.c.bf16 %v1087, %v1085
    %v1092 = vpack.c.bf16 %v1088, %v1086
    %v1094 = vlaneseq
    %v1095 = vshrl.u32 %v1094, 7
    %v1096 = vsub.s32 0, %v1095
    %v1097 = vrot.slane %v98, %v1096
    %v1131 = vunpack.c.l.b16 %v66
    %v1132 = vunpack.c.l.b16 %v67
    %v1133 = vunpack.c.l.b16 %v68
    %v1134 = vunpack.c.l.b16 %v69
    %v1135 = vunpack.c.l.b16 %v70
    %v1136 = vunpack.c.l.b16 %v71
    %v1137 = vunpack.c.l.b16 %v72
    %v1138 = vunpack.c.l.b16 %v73
    %v1139 = vunpack.c.l.b16 %v74
    %v1140 = vunpack.c.l.b16 %v75
    %v1141 = vunpack.c.l.b16 %v76
    %v1142 = vunpack.c.l.b16 %v77
    %v1143 = vunpack.c.l.b16 %v78
    %v1144 = vunpack.c.l.b16 %v79
    %v1145 = vunpack.c.l.b16 %v80
    %v1146 = vunpack.c.l.b16 %v81
    %v1147 = vunpack.c.l.b16 %v82
    %v1148 = vunpack.c.l.b16 %v83
    %v1149 = vunpack.c.l.b16 %v84
    %v1150 = vunpack.c.l.b16 %v85
    %v1151 = vunpack.c.l.b16 %v86
    %v1152 = vunpack.c.l.b16 %v87
    %v1153 = vunpack.c.l.b16 %v88
    %v1154 = vunpack.c.l.b16 %v89
    %v1155 = vunpack.c.l.b16 %v90
    %v1156 = vunpack.c.l.b16 %v91
    %v1157 = vunpack.c.l.b16 %v92
    %v1158 = vunpack.c.l.b16 %v93
    %v1159 = vunpack.c.l.b16 %v94
    %v1160 = vunpack.c.l.b16 %v95
    %v1161 = vunpack.c.l.b16 %v96
    %v1162 = vunpack.c.l.b16 %v97
    %v1163 = vpack.c.b16 %v1132, %v1131
    %v1164 = vpack.c.b16 %v1134, %v1133
    %v1165 = vpack.c.b16 %v1136, %v1135
    %v1166 = vpack.c.b16 %v1138, %v1137
    %v1167 = vpack.c.b16 %v1140, %v1139
    %v1168 = vpack.c.b16 %v1142, %v1141
    %v1169 = vpack.c.b16 %v1144, %v1143
    %v1170 = vpack.c.b16 %v1146, %v1145
    %v1171 = vpack.c.b16 %v1148, %v1147
    %v1172 = vpack.c.b16 %v1150, %v1149
    %v1173 = vpack.c.b16 %v1152, %v1151
    %v1174 = vpack.c.b16 %v1154, %v1153
    %v1175 = vpack.c.b16 %v1156, %v1155
    %v1176 = vpack.c.b16 %v1158, %v1157
    %v1177 = vpack.c.b16 %v1160, %v1159
    %v1178 = vpack.c.b16 %v1162, %v1161
    %1195 = vmatprep.subr.bf16.mxu0 0
    %1196 = vmatpush1.bf16.msra.mxu0 %v1163
    %1197 = vmatprep.subr.bf16.mxu0 0
    %1198 = vmatpush1.bf16.msra.mxu0 %v1164
    %1199 = vmatprep.subr.bf16.mxu0 0
    %1200 = vmatpush1.bf16.msra.mxu0 %v1165
    %1201 = vmatprep.subr.bf16.mxu0 0
    %1202 = vmatpush1.bf16.msra.mxu0 %v1166
    %1203 = vmatprep.subr.bf16.mxu0 0
    %1204 = vmatpush1.bf16.msra.mxu0 %v1167
    %1205 = vmatprep.subr.bf16.mxu0 0
    %1206 = vmatpush1.bf16.msra.mxu0 %v1168
    %1207 = vmatprep.subr.bf16.mxu0 0
    %1208 = vmatpush1.bf16.msra.mxu0 %v1169
    %1209 = vmatprep.subr.bf16.mxu0 0
    %1210 = vmatpush1.bf16.msra.mxu0 %v1170
    %1211 = vmatprep.subr.bf16.mxu0 0
    %1212 = vmatpush1.bf16.msra.mxu0 %v1171
    %1213 = vmatprep.subr.bf16.mxu0 0
    %1214 = vmatpush1.bf16.msra.mxu0 %v1172
    %1215 = vmatprep.subr.bf16.mxu0 0
    %1216 = vmatpush1.bf16.msra.mxu0 %v1173
    %1217 = vmatprep.subr.bf16.mxu0 0
    %1218 = vmatpush1.bf16.msra.mxu0 %v1174
    %1219 = vmatprep.subr.bf16.mxu0 0
    %1220 = vmatpush1.bf16.msra.mxu0 %v1175
    %1221 = vmatprep.subr.bf16.mxu0 0
    %1222 = vmatpush1.bf16.msra.mxu0 %v1176
    %1223 = vmatprep.subr.bf16.mxu0 0
    %1224 = vmatpush1.bf16.msra.mxu0 %v1177
    %1225 = vmatprep.subr.bf16.mxu0 0
    %1226 = vmatpush1.bf16.msra.mxu0 %v1178
    %1227 = vmatprep.mubr.bf16.mxu0 %v1090
    %1228 = vmatmul.mubr.bf16.gmra.mrb[0].mxu0 %v1089
    %v1229 = vpop.f32.mrb[0].mxu0
    %v1230 = vadd.f32 %v1097, %v1229
    %v1231 = vpop.f32.mrb[0].mxu0
    %v1232 = vpop.f32.mrb[0].mxu0
    %v1233 = vadd.f32 %v1097, %v1232
    %v1234 = vpop.f32.mrb[0].mxu0
    %1235 = vmatprep.mubr.bf16.mxu0 %v1092
    %1236 = vmatmul.mubr.bf16.gmra.mrb[0].mxu0 %v1091
    %v1237 = vpop.f32.mrb[0].mxu0
    %v1238 = vadd.f32 %v1097, %v1237
    %v1239 = vpop.f32.mrb[0].mxu0
    %v1240 = vpop.f32.mrb[0].mxu0
    %v1241 = vadd.f32 %v1097, %v1240
    %v1242 = vpop.f32.mrb[0].mxu0
    %1243 = vdwg.mxu0
    %1244 = vst [vmem:[%s5] sm:$0x3f] %v1230
    %1245 = vst [vmem:[%s5 + $0x6] sm:$0x3f] %v1233
    %s1246 = scalar_lea.vmem %s5, 16
    %1247 = vst [vmem:[%s1246] sm:$0x3f] %v1238
    %1248 = vst [vmem:[%s1246 + $0x6] sm:$0x3f] %v1241
    // Predicated region
    $region30: #{vndgcnn_forward.1} parent=1 // pred_check
      _
    $region31: #{vndgcnn_forward.1} parent=1 // pred_check_branch
      %1250 = sbr.rel (0) target = $region33
    $region32: #{vndgcnn_forward.1} parent=1 // pred_region
      _
    $region33: #{vndgcnn_forward.1} parent=1 // pred_fallthru
      _
    // Predicated region
    $region34: #{vndgcnn_forward.1} parent=1 // pred_check
      _
    $region35: #{vndgcnn_forward.1} parent=1 // pred_check_branch
      %1252 = sbr.rel (0) target = $region37
    $region36: #{vndgcnn_forward.1} parent=1 // pred_region
      _
    $region37: #{vndgcnn_forward.1} parent=1 // pred_fallthru
      _
    %1253 = vsyncpa [#allocation5], 1
    %1254 = vsyncpa [#allocation7], 1

</llo_original>
